<compile_context>
chip_gen: v6e
topology: v6e:2x2x1
jax: 0.10.0
libtpu: 0.0.40
codegen_flags: <defaults>
</compile_context>

<pallas_src>
import jax
import jax.numpy as jnp
from jax.experimental import pallas as pl
from jax.experimental.pallas import tpu as pltpu

LN_EPS = 1e-6   # LayerNorm2d eps in the module
BN_EPS = 1e-5   # nn.BatchNorm1d default eps
LANE = 128


def head_kernel(x_ref, w1_ref, b1_ref, w2_ref, b2_ref, w3_ref, b3_ref, out_ref):
    # ---- LayerNorm2d over channels (H = W = 1 => per-sample LN). bf16 ingest,
    #      f32 statistics. Affine (gamma/beta) already folded into w1/b1.
    x = x_ref[...].astype(jnp.float32)                        # [TB, C]
    mu = jnp.mean(x, axis=-1, keepdims=True)
    xc = x - mu
    var = jnp.mean(xc * xc, axis=-1, keepdims=True)           # biased variance (torch)
    h = xc * jax.lax.rsqrt(var + LN_EPS)

    # ---- Linear(1024->512) [+ folded BN1] + ReLU. bf16 MXU inputs, f32 accumulation.
    h = jnp.dot(h.astype(jnp.bfloat16), w1_ref[...],
                preferred_element_type=jnp.float32) + b1_ref[...]
    h = jnp.maximum(h, 0.0)

    # ---- Linear(512->256) [+ folded BN2] + ReLU.
    h = jnp.dot(h.astype(jnp.bfloat16), w2_ref[...],
                preferred_element_type=jnp.float32) + b2_ref[...]
    h = jnp.maximum(h, 0.0)

    # ---- Linear(256->num_classes) (columns lane-padded to a multiple of 128).
    out = jnp.dot(h.astype(jnp.bfloat16), w3_ref[...],
                  preferred_element_type=jnp.float32) + b3_ref[...]
    out_ref[...] = out.astype(out_ref.dtype)


def fold_and_pad_params(p):
    """Fold LN affine + BatchNorm1d (eval mode) into the Linear layers, pad the classifier
    output dim to a lane-dense multiple of 128, and cast matmul weights to bf16.
    NOTE: with trained params whose LN gamma / BN scale are far from 1, re-validate the
    bf16 quantization of the folded w1 (keep w1 in f32 if it regresses)."""
    ln_w = p["ln_w"].reshape(-1).astype(jnp.float32)
    ln_b = p["ln_b"].reshape(-1).astype(jnp.float32)

    s1 = p["bn1_g"].reshape(-1) * jax.lax.rsqrt(p["bn1_v"].reshape(-1) + BN_EPS)
    w1 = (ln_w[:, None] * p["w1"]) * s1[None, :]
    b1 = (ln_b @ p["w1"] + p["b1"].reshape(-1) - p["bn1_m"].reshape(-1)) * s1 \
        + p["bn1_b"].reshape(-1)

    s2 = p["bn2_g"].reshape(-1) * jax.lax.rsqrt(p["bn2_v"].reshape(-1) + BN_EPS)
    w2 = p["w2"] * s2[None, :]
    b2 = (p["b2"].reshape(-1) - p["bn2_m"].reshape(-1)) * s2 + p["bn2_b"].reshape(-1)

    num_classes = p["w3"].shape[1]
    n_pad = max(LANE, ((num_classes + LANE - 1) // LANE) * LANE)
    w3 = jnp.zeros((p["w3"].shape[0], n_pad), jnp.float32).at[:, :num_classes].set(p["w3"])
    b3 = jnp.zeros((n_pad,), jnp.float32).at[:num_classes].set(p["b3"].reshape(-1))

    return {
        "w1": w1.astype(jnp.bfloat16), "b1": b1.reshape(1, -1).astype(jnp.float32),
        "w2": w2.astype(jnp.bfloat16), "b2": b2.reshape(1, -1).astype(jnp.float32),
        "w3": w3.astype(jnp.bfloat16), "b3": b3.reshape(1, -1).astype(jnp.float32),
        "num_classes": num_classes,
    }


def _batch_tiling(B):
    """Pick (batch tile, padded batch).

    Multi-step grids restore input-DMA/compute pipelining and the v7x two-TensorCore
    'parallel' split; tb=256 fills the 256-wide v6e/v7x MXU for large batches. Tiny
    batches stay a single latency-bound step."""
    b8 = ((B + 7) // 8) * 8                    # sublane multiple
    if b8 >= 512:
        tb = 256                               # 2x256^2 MXU fill, grid >= 2
    elif b8 >= 256:
        tb = 128                               # grid >= 2 (megacore) with modest padding
    elif b8 >= 32:
        tb = ((b8 + 31) // 32) * 16            # ~half the batch, bf16 sublane(16)-aligned
    else:
        tb = b8                                # tiny batch: one block (== full array)
    b_pad = ((b8 + tb - 1) // tb) * tb
    return tb, b_pad


def classification_head(x_nchw, fp):
    """x_nchw: [B, C, 1, 1] pooled backbone features. Returns logits [B, num_classes]."""
    B, C, H, W = x_nchw.shape
    assert H == 1 and W == 1, "expects globally pooled features"

    tb, b_pad = _batch_tiling(B)
    grid = (b_pad // tb,)

    # bf16 ingest halves the dominant per-sample HBM read; LN stats stay f32 in-kernel.
    x = x_nchw.reshape(B, C).astype(jnp.bfloat16)            # permute+flatten (H=W=1)
    if b_pad != B:
        x = jnp.pad(x, ((0, b_pad - B), (0, 0)))

    w1, b1 = fp["w1"], fp["b1"]
    w2, b2 = fp["w2"], fp["b2"]
    w3, b3 = fp["w3"], fp["b3"]
    h1, h2, n_pad = w1.shape[1], w2.shape[1], w3.shape[1]

    def const(shape):  # fully VMEM-resident operand, same block every grid step
        return pl.BlockSpec(shape, lambda i: (0, 0))

    flops = 2 * b_pad * (C * h1 + h1 * h2 + h2 * n_pad) + 6 * b_pad * C
    bytes_accessed = int(
        x.size * x.dtype.itemsize
        + sum(a.size * a.dtype.itemsize for a in (w1, b1, w2, b2, w3, b3))
        + b_pad * n_pad * 4)

    out = pl.pallas_call(
        head_kernel,
        out_shape=jax.ShapeDtypeStruct((b_pad, n_pad), jnp.float32),
        grid=grid,
        in_specs=[
            pl.BlockSpec((tb, C), lambda i: (i, 0)),
            const(w1.shape), const(b1.shape),
            const(w2.shape), const(b2.shape),
            const(w3.shape), const(b3.shape),
        ],
        out_specs=pl.BlockSpec((tb, n_pad), lambda i: (i, 0)),
        compiler_params=pltpu.CompilerParams(dimension_semantics=("parallel",)),
        cost_estimate=pl.CostEstimate(flops=flops, transcendentals=0,
                                      bytes_accessed=bytes_accessed),
    )(x, w1, b1, w2, b2, w3, b3)

    return out[:B, :fp["num_classes"]]


def init_params(key, in_features=1024, num_classes=10):
    """Raw torch-style parameters of the head (LN + 3 Linear + 2 BatchNorm, eval mode)."""
    h1, h2 = in_features // 2, in_features // 4
    ks = jax.random.split(key, 8)

    def lin(k, fan_in, fan_out):
        bound = 1.0 / jnp.sqrt(fan_in)
        kw, kb = jax.random.split(k)
        w = jax.random.uniform(kw, (fan_in, fan_out), jnp.float32, -bound, bound)
        b = jax.random.uniform(kb, (1, fan_out), jnp.float32, -bound, bound)
        return w, b

    w1, b1 = lin(ks[0], in_features, h1)
    w2, b2 = lin(ks[1], h1, h2)
    w3, b3 = lin(ks[2], h2, num_classes)

    return {
        "ln_w": jnp.ones((1, in_features), jnp.float32),
        "ln_b": jnp.zeros((1, in_features), jnp.float32),
        "w1": w1, "b1": b1,
        "bn1_g": jnp.ones((1, h1), jnp.float32),
        "bn1_b": jnp.zeros((1, h1), jnp.float32),
        "bn1_m": 0.1 * jax.random.normal(ks[3], (1, h1), jnp.float32),
        "bn1_v": 1.0 + 0.1 * jax.random.uniform(ks[4], (1, h1), jnp.float32),
        "w2": w2, "b2": b2,
        "bn2_g": jnp.ones((1, h2), jnp.float32),
        "bn2_b": jnp.zeros((1, h2), jnp.float32),
        "bn2_m": 0.1 * jax.random.normal(ks[5], (1, h2), jnp.float32),
        "bn2_v": 1.0 + 0.1 * jax.random.uniform(ks[6], (1, h2), jnp.float32),
        "w3": w3, "b3": b3,
    }


def reference_head(x_nchw, p):
    """Pure-JAX f32 reference of the torch head (eval mode, Dropout = identity), un-folded."""
    B, C, _, _ = x_nchw.shape
    x = x_nchw.reshape(B, C)
    mu = jnp.mean(x, axis=-1, keepdims=True)
    var = jnp.mean((x - mu) ** 2, axis=-1, keepdims=True)
    h = (x - mu) / jnp.sqrt(var + LN_EPS) * p["ln_w"] + p["ln_b"]
    h = h @ p["w1"] + p["b1"]
    h = (h - p["bn1_m"]) / jnp.sqrt(p["bn1_v"] + BN_EPS) * p["bn1_g"] + p["bn1_b"]
    h = jnp.maximum(h, 0.0)
    h = h @ p["w2"] + p["b2"]
    h = (h - p["bn2_m"]) / jnp.sqrt(p["bn2_v"] + BN_EPS) * p["bn2_g"] + p["bn2_b"]
    h = jnp.maximum(h, 0.0)
    return h @ p["w3"] + p["b3"]


def reference_head_folded(x_nchw, fp):
    """Pure-JAX mimic of the kernel math (bf16 input/weights, f32 stats & accumulation)."""
    B, C, _, _ = x_nchw.shape
    x = x_nchw.reshape(B, C).astype(jnp.bfloat16).astype(jnp.float32)
    mu = jnp.mean(x, axis=-1, keepdims=True)
    xc = x - mu
    var = jnp.mean(xc * xc, axis=-1, keepdims=True)
    h = xc * jax.lax.rsqrt(var + LN_EPS)
    h = jnp.dot(h.astype(jnp.bfloat16), fp["w1"], preferred_element_type=jnp.float32) + fp["b1"]
    h = jnp.maximum(h, 0.0)
    h = jnp.dot(h.astype(jnp.bfloat16), fp["w2"], preferred_element_type=jnp.float32) + fp["b2"]
    h = jnp.maximum(h, 0.0)
    out = jnp.dot(h.astype(jnp.bfloat16), fp["w3"], preferred_element_type=jnp.float32) + fp["b3"]
    return out[:, :fp["num_classes"]]


if __name__ == "__main__":
    key = jax.random.PRNGKey(0)
    k_x, k_p = jax.random.split(key)

    C, NUM_CLASSES = 1024, 10                 # ConvNeXt path: in_features = 1024
    params = init_params(k_p, in_features=C, num_classes=NUM_CLASSES)
    folded = fold_and_pad_params(params)

    # B=8: tiny-batch single-block path.  B=40: padded multi-block grid=2 path
    # (exercises the new tile/pad policy driving megacore + pipelining).
    for B in (8, 40):
        x = jax.random.normal(jax.random.fold_in(k_x, B), (B, C, 1, 1), jnp.float32)

        out = jax.block_until_ready(classification_head(x, folded))
        assert out.shape == (B, NUM_CLASSES)

        ref_mimic = jax.block_until_ready(reference_head_folded(x, folded))
        ref_exact = jax.block_until_ready(reference_head(x, params))
        # Tight check vs. same-precision (folded / bf16 input+weight) reference.
        assert jnp.allclose(out, ref_mimic, atol=1e-2, rtol=1e-2), \
            f"mismatch vs folded bf16 reference (B={B})"
        # Loose check vs. full-f32 torch-equivalent head (bf16 ingest+weights => ~1% drift).
        assert jnp.allclose(out, ref_exact, atol=5e-2, rtol=5e-2), \
            f"mismatch vs f32 reference (B={B})"

    print("KERNEL_OK")
</pallas_src>

<mosaic_0001>
module attributes {stable_mosaic.version = 11 : i64} {
  func.func @head_kernel(%arg0: i32, %arg1: memref<8x1024xbf16, #tpu.memory_space<vmem>>, %arg2: memref<1024x512xbf16, #tpu.memory_space<vmem>>, %arg3: memref<1x512xf32, #tpu.memory_space<vmem>>, %arg4: memref<512x256xbf16, #tpu.memory_space<vmem>>, %arg5: memref<1x256xf32, #tpu.memory_space<vmem>>, %arg6: memref<256x128xbf16, #tpu.memory_space<vmem>>, %arg7: memref<1x128xf32, #tpu.memory_space<vmem>>, %arg8: memref<8x128xf32, #tpu.memory_space<vmem>>) attributes {dimension_semantics = [#tpu.dimension_semantics<parallel>], iteration_bounds = array<i64: 1>, scalar_prefetch = 0 : i64, scratch_operands = 0 : i64, tpu.core_type = #tpu.core_type<tc>, window_params = [{transform_indices = @transform_0, window_bounds = array<i64: 8, 1024>}, {pipeline_mode = #tpu.pipeline_mode<synchronous>, transform_indices = @transform_1, window_bounds = array<i64: 1024, 512>}, {pipeline_mode = #tpu.pipeline_mode<synchronous>, transform_indices = @transform_2, window_bounds = array<i64: 1, 512>}, {pipeline_mode = #tpu.pipeline_mode<synchronous>, transform_indices = @transform_3, window_bounds = array<i64: 512, 256>}, {pipeline_mode = #tpu.pipeline_mode<synchronous>, transform_indices = @transform_4, window_bounds = array<i64: 1, 256>}, {pipeline_mode = #tpu.pipeline_mode<synchronous>, transform_indices = @transform_5, window_bounds = array<i64: 256, 128>}, {pipeline_mode = #tpu.pipeline_mode<synchronous>, transform_indices = @transform_6, window_bounds = array<i64: 1, 128>}, {transform_indices = @transform_7, window_bounds = array<i64: 8, 128>}]} {
    %c0 = arith.constant 0 : index
    %c0_0 = arith.constant 0 : index
    %0 = vector.load %arg1[%c0, %c0_0] : memref<8x1024xbf16, #tpu.memory_space<vmem>>, vector<8x1024xbf16>
    %1 = arith.extf %0 : vector<8x1024xbf16> to vector<8x1024xf32>
    %cst = arith.constant dense<0.000000e+00> : vector<8xf32>
    %2 = vector.multi_reduction <add>, %1, %cst [1] : vector<8x1024xf32> to vector<8xf32>
    %3 = vector.shape_cast %2 : vector<8xf32> to vector<8x1xf32>
    %cst_1 = arith.constant 1.024000e+03 : f32
    %4 = vector.broadcast %cst_1 : f32 to vector<8x1xf32>
    %5 = arith.divf %3, %4 : vector<8x1xf32>
    %6 = vector.broadcast %5 : vector<8x1xf32> to vector<8x1024xf32>
    %7 = arith.subf %1, %6 : vector<8x1024xf32>
    %8 = arith.mulf %7, %7 : vector<8x1024xf32>
    %cst_2 = arith.constant dense<0.000000e+00> : vector<8xf32>
    %9 = vector.multi_reduction <add>, %8, %cst_2 [1] : vector<8x1024xf32> to vector<8xf32>
    %10 = vector.shape_cast %9 : vector<8xf32> to vector<8x1xf32>
    %cst_3 = arith.constant 1.024000e+03 : f32
    %11 = vector.broadcast %cst_3 : f32 to vector<8x1xf32>
    %12 = arith.divf %10, %11 : vector<8x1xf32>
    %cst_4 = arith.constant 9.99999997E-7 : f32
    %13 = vector.broadcast %cst_4 : f32 to vector<8x1xf32>
    %14 = arith.addf %12, %13 : vector<8x1xf32>
    %15 = math.rsqrt %14 : vector<8x1xf32>
    %16 = vector.broadcast %15 : vector<8x1xf32> to vector<8x1024xf32>
    %17 = arith.mulf %7, %16 : vector<8x1024xf32>
    %18 = arith.truncf %17 : vector<8x1024xf32> to vector<8x1024xbf16>
    %c0_5 = arith.constant 0 : index
    %c0_6 = arith.constant 0 : index
    %19 = vector.load %arg2[%c0_5, %c0_6] : memref<1024x512xbf16, #tpu.memory_space<vmem>>, vector<1024x512xbf16>
    %cst_7 = arith.constant dense<0.000000e+00> : vector<8x512xf32>
    %20 = tpu.matmul %18, %19, %cst_7 {dimension_numbers = #tpu.dot_dimension_numbers<[1], [0], [0], [1], [0, 0, 1, 1], [], []>} : vector<8x1024xbf16>, vector<1024x512xbf16>, vector<8x512xf32> -> vector<8x512xf32>
    %c0_8 = arith.constant 0 : index
    %c0_9 = arith.constant 0 : index
    %21 = vector.load %arg3[%c0_8, %c0_9] : memref<1x512xf32, #tpu.memory_space<vmem>>, vector<1x512xf32>
    %22 = vector.broadcast %21 : vector<1x512xf32> to vector<8x512xf32>
    %23 = arith.addf %20, %22 : vector<8x512xf32>
    %cst_10 = arith.constant 0.000000e+00 : f32
    %24 = vector.broadcast %cst_10 : f32 to vector<8x512xf32>
    %25 = arith.maximumf %23, %24 : vector<8x512xf32>
    %26 = arith.truncf %25 : vector<8x512xf32> to vector<8x512xbf16>
    %c0_11 = arith.constant 0 : index
    %c0_12 = arith.constant 0 : index
    %27 = vector.load %arg4[%c0_11, %c0_12] : memref<512x256xbf16, #tpu.memory_space<vmem>>, vector<512x256xbf16>
    %cst_13 = arith.constant dense<0.000000e+00> : vector<8x256xf32>
    %28 = tpu.matmul %26, %27, %cst_13 {dimension_numbers = #tpu.dot_dimension_numbers<[1], [0], [0], [1], [0, 0, 1, 1], [], []>} : vector<8x512xbf16>, vector<512x256xbf16>, vector<8x256xf32> -> vector<8x256xf32>
    %c0_14 = arith.constant 0 : index
    %c0_15 = arith.constant 0 : index
    %29 = vector.load %arg5[%c0_14, %c0_15] : memref<1x256xf32, #tpu.memory_space<vmem>>, vector<1x256xf32>
    %30 = vector.broadcast %29 : vector<1x256xf32> to vector<8x256xf32>
    %31 = arith.addf %28, %30 : vector<8x256xf32>
    %cst_16 = arith.constant 0.000000e+00 : f32
    %32 = vector.broadcast %cst_16 : f32 to vector<8x256xf32>
    %33 = arith.maximumf %31, %32 : vector<8x256xf32>
    %34 = arith.truncf %33 : vector<8x256xf32> to vector<8x256xbf16>
    %c0_17 = arith.constant 0 : index
    %c0_18 = arith.constant 0 : index
    %35 = vector.load %arg6[%c0_17, %c0_18] : memref<256x128xbf16, #tpu.memory_space<vmem>>, vector<256x128xbf16>
    %cst_19 = arith.constant dense<0.000000e+00> : vector<8x128xf32>
    %36 = tpu.matmul %34, %35, %cst_19 {dimension_numbers = #tpu.dot_dimension_numbers<[1], [0], [0], [1], [0, 0, 1, 1], [], []>} : vector<8x256xbf16>, vector<256x128xbf16>, vector<8x128xf32> -> vector<8x128xf32>
    %c0_20 = arith.constant 0 : index
    %c0_21 = arith.constant 0 : index
    %37 = vector.load %arg7[%c0_20, %c0_21] : memref<1x128xf32, #tpu.memory_space<vmem>>, vector<1x128xf32>
    %38 = vector.broadcast %37 : vector<1x128xf32> to vector<8x128xf32>
    %39 = arith.addf %36, %38 : vector<8x128xf32>
    %c0_22 = arith.constant 0 : index
    %c0_23 = arith.constant 0 : index
    %40 = vector.load %arg8[%c0_22, %c0_23] : memref<8x128xf32, #tpu.memory_space<vmem>>, vector<8x128xf32>
    tpu.vector_store %arg8[%c0_22, %c0_23], %39 {strides = array<i32>} : memref<8x128xf32, #tpu.memory_space<vmem>>, vector<8x128xf32>,
    return
  }
  func.func @transform_0(%arg0: i32) -> (i32, i32) {
    %c0_i32 = arith.constant 0 : i32
    %c0_i32_0 = arith.constant 0 : i32
    return %arg0, %c0_i32 : i32, i32
  }
  func.func @transform_1(%arg0: i32) -> (i32, i32) {
    %c0_i32 = arith.constant 0 : i32
    %c0_i32_0 = arith.constant 0 : i32
    %c0_i32_1 = arith.constant 0 : i32
    return %c0_i32, %c0_i32_0 : i32, i32
  }
  func.func @transform_2(%arg0: i32) -> (i32, i32) {
    %c0_i32 = arith.constant 0 : i32
    %c0_i32_0 = arith.constant 0 : i32
    %c0_i32_1 = arith.constant 0 : i32
    return %c0_i32, %c0_i32_0 : i32, i32
  }
  func.func @transform_3(%arg0: i32) -> (i32, i32) {
    %c0_i32 = arith.constant 0 : i32
    %c0_i32_0 = arith.constant 0 : i32
    %c0_i32_1 = arith.constant 0 : i32
    return %c0_i32, %c0_i32_0 : i32, i32
  }
  func.func @transform_4(%arg0: i32) -> (i32, i32) {
    %c0_i32 = arith.constant 0 : i32
    %c0_i32_0 = arith.constant 0 : i32
    %c0_i32_1 = arith.constant 0 : i32
    return %c0_i32, %c0_i32_0 : i32, i32
  }
  func.func @transform_5(%arg0: i32) -> (i32, i32) {
    %c0_i32 = arith.constant 0 : i32
    %c0_i32_0 = arith.constant 0 : i32
    %c0_i32_1 = arith.constant 0 : i32
    return %c0_i32, %c0_i32_0 : i32, i32
  }
  func.func @transform_6(%arg0: i32) -> (i32, i32) {
    %c0_i32 = arith.constant 0 : i32
    %c0_i32_0 = arith.constant 0 : i32
    %c0_i32_1 = arith.constant 0 : i32
    return %c0_i32, %c0_i32_0 : i32, i32
  }
  func.func @transform_7(%arg0: i32) -> (i32, i32) {
    %c0_i32 = arith.constant 0 : i32
    %c0_i32_0 = arith.constant 0 : i32
    return %arg0, %c0_i32 : i32, i32
  }
}

</mosaic_0001>

<llo_original>
// kernel: tpu_custom_call.1
$region0: #{tpu_custom_call.1}
  #allocation0 [shape = 'u32[]', space=smem, size = 0x4, offset = 0x4, fixed_abs, tag = 'smem constant byte address 0x4 - core index']
  #allocation1 [shape = 'u32[144,128]{1,0:T(1,128)}', space=vmem, size = 0x12000, scoped, tag = 'internal scratch']
  %s0 = inlined_call_operand.hbm [shape: bf16[8,1024], index: 0, kind: input, shape index: {}]
  %s1 = inlined_call_operand.hbm [shape: bf16[1024,512], index: 1, kind: input, shape index: {}]
  %s2 = inlined_call_operand.hbm [shape: f32[1,512], index: 2, kind: input, shape index: {}]
  %s3 = inlined_call_operand.hbm [shape: bf16[512,256], index: 3, kind: input, shape index: {}]
  %s4 = inlined_call_operand.vmem [shape: f32[1,256], index: 4, kind: input, shape index: {}]
  %s5 = inlined_call_operand.hbm [shape: bf16[256,128], index: 5, kind: input, shape index: {}]
  %s6 = inlined_call_operand.vmem [shape: f32[1,128], index: 6, kind: input, shape index: {}]
  %s7 = inlined_call_operand.hbm [shape: f32[8,128], index: 7, kind: output, shape index: {}]
  %s8 = sld [smem:[#allocation0]]
  $region58: #{tpu_custom_call.1} parent=0
    _
  %s10 = ssub.s32 1, %s8
  %s11 = scalar_select 0, %s10, %s8
  $region1: #{tpu_custom_call.1} parent=0
    #allocation2 [shape = 'u8[16384]{0}', space=vmem, size = 0x4000, scoped, tag = 'input window, operand 0, single buffered']
    #allocation3 [shape = 's32[1]{0}', space=sflag, size = 0x4, scoped, tag = 'scoped memory for tpu_custom_call.1']
    #allocation4 [shape = 's32[1]{0}', space=sflag, size = 0x4, scoped, tag = 'scoped memory for tpu_custom_call.1']
    #allocation5 [shape = 'u8[1048576]{0}', space=vmem, size = 0x100000, scoped, tag = 'input window, operand 1, single buffered']
    #allocation6 [shape = 's32[1]{0}', space=sflag, size = 0x4, scoped, tag = 'scoped memory for tpu_custom_call.1']
    #allocation7 [shape = 'u8[2048]{0}', space=vmem, size = 0x800, scoped, tag = 'input window, operand 2, single buffered']
    #allocation8 [shape = 'u8[262144]{0}', space=vmem, size = 0x40000, scoped, tag = 'input window, operand 3, single buffered']
    #allocation9 [shape = 's32[1]{0}', space=sflag, size = 0x4, scoped, tag = 'scoped memory for tpu_custom_call.1']
    #allocation10 [shape = 'u8[65536]{0}', space=vmem, size = 0x10000, scoped, tag = 'input window, operand 5, single buffered']
    #allocation11 [shape = 'u8[4096]{0}', space=vmem, size = 0x1000, scoped, tag = 'output window, operand 0, single buffered']
    %12 = vsyncpa [#allocation3], 0
    %13 = vsyncpa [#allocation6], 0
    %14 = vsyncpa [#allocation9], 0
    %15 = vsyncpa [#allocation4], 0
    // Predicated region
    $region2: #{tpu_custom_call.1} parent=1 // pred_check
      _
    $region3: #{tpu_custom_call.1} parent=1 // pred_check_branch
      %17 = sbr.rel (0) target = $region5
    $region4: #{tpu_custom_call.1} parent=1 // pred_region
      %s19 = ssub.s32 512, 512
      %20 = vsyncadd [#allocation3], %s19
      %s22 = sshll.u32 [#allocation2], 4
      %s23 = int_to_ptr.vmem [resolvable:$true] %s22
      %25 = dma.hbm_to_vmem [thread:$0]  %s0, 512, %s23, [#allocation3]
    $region5: #{tpu_custom_call.1} parent=1 // pred_fallthru
      _
    // Predicated region
    $region6: #{tpu_custom_call.1} parent=1 // pred_check
      _
    $region7: #{tpu_custom_call.1} parent=1 // pred_check_branch
      %27 = sbr.rel (0) target = $region9
    $region8: #{tpu_custom_call.1} parent=1 // pred_region
      %s29 = ssub.s32 32768, 32768
      %30 = vsyncadd [#allocation6], %s29
      %s31 = sshll.u32 [#allocation5], 4
      %s32 = int_to_ptr.vmem [resolvable:$true] %s31
      %37 = dma.hbm_to_vmem [thread:$0]  %s1, 32768, %s32, [#allocation6], 256, 256, 16
    $region9: #{tpu_custom_call.1} parent=1 // pred_fallthru
      _
    // Predicated region
    $region10: #{tpu_custom_call.1} parent=1 // pred_check
      _
    $region11: #{tpu_custom_call.1} parent=1 // pred_check_branch
      %39 = sbr.rel (0) target = $region13
    $region12: #{tpu_custom_call.1} parent=1 // pred_region
      %s41 = ssub.s32 64, 64
      %42 = vsyncadd [#allocation6], %s41
      %s44 = sshll.u32 [#allocation7], 4
      %s45 = int_to_ptr.vmem [resolvable:$true] %s44
      %47 = dma.hbm_to_vmem [thread:$0]  %s2, 64, %s45, [#allocation6]
    $region13: #{tpu_custom_call.1} parent=1 // pred_fallthru
      _
    // Predicated region
    $region14: #{tpu_custom_call.1} parent=1 // pred_check
      _
    $region15: #{tpu_custom_call.1} parent=1 // pred_check_branch
      %49 = sbr.rel (0) target = $region17
    $region16: #{tpu_custom_call.1} parent=1 // pred_region
      %s51 = ssub.s32 8192, 8192
      %52 = vsyncadd [#allocation9], %s51
      %s53 = sshll.u32 [#allocation8], 4
      %s54 = int_to_ptr.vmem [resolvable:$true] %s53
      %59 = dma.hbm_to_vmem [thread:$0]  %s3, 8192, %s54, [#allocation9], 128, 128, 8
    $region17: #{tpu_custom_call.1} parent=1 // pred_fallthru
      _
    // Predicated region
    $region18: #{tpu_custom_call.1} parent=1 // pred_check
      _
    $region19: #{tpu_custom_call.1} parent=1 // pred_check_branch
      %61 = sbr.rel (0) target = $region21
    $region20: #{tpu_custom_call.1} parent=1 // pred_region
      _
    $region21: #{tpu_custom_call.1} parent=1 // pred_fallthru
      _
    // Predicated region
    $region22: #{tpu_custom_call.1} parent=1 // pred_check
      _
    $region23: #{tpu_custom_call.1} parent=1 // pred_check_branch
      %63 = sbr.rel (0) target = $region25
    $region24: #{tpu_custom_call.1} parent=1 // pred_region
      %s65 = ssub.s32 2048, 2048
      %66 = vsyncadd [#allocation9], %s65
      %s67 = sshll.u32 [#allocation10], 4
      %s68 = int_to_ptr.vmem [resolvable:$true] %s67
      %73 = dma.hbm_to_vmem [thread:$0]  %s5, 2048, %s68, [#allocation9], 64, 64, 4
    $region25: #{tpu_custom_call.1} parent=1 // pred_fallthru
      _
    // Predicated region
    $region26: #{tpu_custom_call.1} parent=1 // pred_check
      _
    $region27: #{tpu_custom_call.1} parent=1 // pred_check_branch
      %75 = sbr.rel (0) target = $region29
    $region28: #{tpu_custom_call.1} parent=1 // pred_region
      _
    $region29: #{tpu_custom_call.1} parent=1 // pred_fallthru
      _
    // Predicated region
    $region30: #{tpu_custom_call.1} parent=1 // pred_check
      _
    $region31: #{tpu_custom_call.1} parent=1 // pred_check_branch
      %77 = sbr.rel (0) target = $region33
    $region32: #{tpu_custom_call.1} parent=1 // pred_region
      %78 = dma.done [#allocation3], 512
    $region33: #{tpu_custom_call.1} parent=1 // pred_fallthru
      _
    // Predicated region
    $region34: #{tpu_custom_call.1} parent=1 // pred_check
      _
    $region35: #{tpu_custom_call.1} parent=1 // pred_check_branch
      %80 = sbr.rel (0) target = $region37
    $region36: #{tpu_custom_call.1} parent=1 // pred_region
      %81 = dma.done [#allocation6], 32768
    $region37: #{tpu_custom_call.1} parent=1 // pred_fallthru
      _
    // Predicated region
    $region38: #{tpu_custom_call.1} parent=1 // pred_check
      _
    $region39: #{tpu_custom_call.1} parent=1 // pred_check_branch
      %83 = sbr.rel (0) target = $region41
    $region40: #{tpu_custom_call.1} parent=1 // pred_region
      %84 = dma.done [#allocation6], 64
    $region41: #{tpu_custom_call.1} parent=1 // pred_fallthru
      _
    // Predicated region
    $region42: #{tpu_custom_call.1} parent=1 // pred_check
      _
    $region43: #{tpu_custom_call.1} parent=1 // pred_check_branch
      %86 = sbr.rel (0) target = $region45
    $region44: #{tpu_custom_call.1} parent=1 // pred_region
      %87 = dma.done [#allocation9], 8192
    $region45: #{tpu_custom_call.1} parent=1 // pred_fallthru
      _
    // Predicated region
    $region46: #{tpu_custom_call.1} parent=1 // pred_check
      _
    $region47: #{tpu_custom_call.1} parent=1 // pred_check_branch
      %89 = sbr.rel (0) target = $region49
    $region48: #{tpu_custom_call.1} parent=1 // pred_region
      %90 = dma.done [#allocation9], 2048
    $region49: #{tpu_custom_call.1} parent=1 // pred_fallthru
      _
    %v92 = vld [vmem:[#allocation2] sm:$0xff]
    %v93 = vld [vmem:[#allocation2 + $0x8] sm:$0xff]
    %v94 = vld [vmem:[#allocation2 + $0x10] sm:$0xff]
    %v95 = vld [vmem:[#allocation2 + $0x18] sm:$0xff]
    %v96 = vunpack.c.l.bf16 %v92
    %v97 = vunpack.c.h.bf16 %v92
    %v98 = vunpack.c.l.bf16 %v93
    %v99 = vunpack.c.h.bf16 %v93
    %v100 = vunpack.c.l.bf16 %v94
    %v101 = vunpack.c.h.bf16 %v94
    %v102 = vunpack.c.l.bf16 %v95
    %v103 = vunpack.c.h.bf16 %v95
    %v104 = vadd.f32 %v96, %v97
    %v105 = vadd.f32 %v104, %v98
    %v106 = vadd.f32 %v105, %v99
    %v107 = vadd.f32 %v106, %v100
    %v108 = vadd.f32 %v107, %v101
    %v109 = vadd.f32 %v108, %v102
    %v110 = vadd.f32 %v109, %v103
    %111 = vadd.xlane.f32.xlu0 %v110
    %v112 = vpop.xlane.xlu0 %111
    %v113 = vrcp.pop 1024.0
    %v114 = vmul.f32 %v112, %v113
    %v115 = vsub.f32 %v96, %v114
    %v116 = vsub.f32 %v97, %v114
    %v117 = vsub.f32 %v98, %v114
    %v118 = vsub.f32 %v99, %v114
    %v119 = vsub.f32 %v100, %v114
    %v120 = vsub.f32 %v101, %v114
    %v121 = vsub.f32 %v102, %v114
    %v122 = vsub.f32 %v103, %v114
    %v123 = vmul.f32 %v115, %v115
    %v124 = vmul.f32 %v116, %v116
    %v125 = vmul.f32 %v117, %v117
    %v126 = vmul.f32 %v118, %v118
    %v127 = vmul.f32 %v119, %v119
    %v128 = vmul.f32 %v120, %v120
    %v129 = vmul.f32 %v121, %v121
    %v130 = vmul.f32 %v122, %v122
    %v131 = vadd.f32 %v123, %v124
    %v132 = vadd.f32 %v131, %v125
    %v133 = vadd.f32 %v132, %v126
    %v134 = vadd.f32 %v133, %v127
    %v135 = vadd.f32 %v134, %v128
    %v136 = vadd.f32 %v135, %v129
    %v137 = vadd.f32 %v136, %v130
    %138 = vadd.xlane.f32.xlu0 %v137
    %v139 = vpop.xlane.xlu0 %138
    %v140 = vmul.f32 %v139, %v113
    %v141 = vadd.f32 %v140, 1e-06
    %v142 = vrsqrt.pop %v141
    %v143 = vmul.f32 %v115, %v142
    %v144 = vmul.f32 %v116, %v142
    %v145 = vmul.f32 %v117, %v142
    %v146 = vmul.f32 %v118, %v142
    %v147 = vmul.f32 %v119, %v142
    %v148 = vmul.f32 %v120, %v142
    %v149 = vmul.f32 %v121, %v142
    %v150 = vmul.f32 %v122, %v142
    %v151 = vpack.c.bf16 %v143, %v143
    %v152 = vpack.c.bf16 %v144, %v144
    %v153 = vpack.c.bf16 %v145, %v145
    %v154 = vpack.c.bf16 %v146, %v146
    %v155 = vpack.c.bf16 %v147, %v147
    %v156 = vpack.c.bf16 %v148, %v148
    %v157 = vpack.c.bf16 %v149, %v149
    %v158 = vpack.c.bf16 %v150, %v150
    %v159 = vld [vmem:[#allocation5] sm:$0xff]
    %v160 = vld [vmem:[#allocation5 + $0x8] sm:$0xff]
    %v161 = vld [vmem:[#allocation5 + $0x10] sm:$0xff]
    %v162 = vld [vmem:[#allocation5 + $0x18] sm:$0xff]
    %v163 = vld [vmem:[#allocation5 + $0x20] sm:$0xff]
    %v164 = vld [vmem:[#allocation5 + $0x28] sm:$0xff]
    %v165 = vld [vmem:[#allocation5 + $0x30] sm:$0xff]
    %v166 = vld [vmem:[#allocation5 + $0x38] sm:$0xff]
    %v167 = vld [vmem:[#allocation5 + $0x40] sm:$0xff]
    %v168 = vld [vmem:[#allocation5 + $0x48] sm:$0xff]
    %v169 = vld [vmem:[#allocation5 + $0x50] sm:$0xff]
    %v170 = vld [vmem:[#allocation5 + $0x58] sm:$0xff]
    %v171 = vld [vmem:[#allocation5 + $0x60] sm:$0xff]
    %v172 = vld [vmem:[#allocation5 + $0x68] sm:$0xff]
    %v173 = vld [vmem:[#allocation5 + $0x70] sm:$0xff]
    %v174 = vld [vmem:[#allocation5 + $0x78] sm:$0xff]
    %v175 = vld [vmem:[#allocation5 + $0x80] sm:$0xff]
    %v176 = vld [vmem:[#allocation5 + $0x88] sm:$0xff]
    %v177 = vld [vmem:[#allocation5 + $0x90] sm:$0xff]
    %v178 = vld [vmem:[#allocation5 + $0x98] sm:$0xff]
    %v179 = vld [vmem:[#allocation5 + $0xa0] sm:$0xff]
    %v180 = vld [vmem:[#allocation5 + $0xa8] sm:$0xff]
    %v181 = vld [vmem:[#allocation5 + $0xb0] sm:$0xff]
    %v182 = vld [vmem:[#allocation5 + $0xb8] sm:$0xff]
    %v183 = vld [vmem:[#allocation5 + $0xc0] sm:$0xff]
    %v184 = vld [vmem:[#allocation5 + $0xc8] sm:$0xff]
    %v185 = vld [vmem:[#allocation5 + $0xd0] sm:$0xff]
    %v186 = vld [vmem:[#allocation5 + $0xd8] sm:$0xff]
    %v187 = vld [vmem:[#allocation5 + $0xe0] sm:$0xff]
    %v188 = vld [vmem:[#allocation5 + $0xe8] sm:$0xff]
    %v189 = vld [vmem:[#allocation5 + $0xf0] sm:$0xff]
    %v190 = vld [vmem:[#allocation5 + $0xf8] sm:$0xff]
    %v191 = vld [vmem:[#allocation5 + $0x100] sm:$0xff]
    %v192 = vld [vmem:[#allocation5 + $0x108] sm:$0xff]
    %v193 = vld [vmem:[#allocation5 + $0x110] sm:$0xff]
    %v194 = vld [vmem:[#allocation5 + $0x118] sm:$0xff]
    %v195 = vld [vmem:[#allocation5 + $0x120] sm:$0xff]
    %v196 = vld [vmem:[#allocation5 + $0x128] sm:$0xff]
    %v197 = vld [vmem:[#allocation5 + $0x130] sm:$0xff]
    %v198 = vld [vmem:[#allocation5 + $0x138] sm:$0xff]
    %v199 = vld [vmem:[#allocation5 + $0x140] sm:$0xff]
    %v200 = vld [vmem:[#allocation5 + $0x148] sm:$0xff]
    %v201 = vld [vmem:[#allocation5 + $0x150] sm:$0xff]
    %v202 = vld [vmem:[#allocation5 + $0x158] sm:$0xff]
    %v203 = vld [vmem:[#allocation5 + $0x160] sm:$0xff]
    %v204 = vld [vmem:[#allocation5 + $0x168] sm:$0xff]
    %v205 = vld [vmem:[#allocation5 + $0x170] sm:$0xff]
    %v206 = vld [vmem:[#allocation5 + $0x178] sm:$0xff]
    %v207 = vld [vmem:[#allocation5 + $0x180] sm:$0xff]
    %v208 = vld [vmem:[#allocation5 + $0x188] sm:$0xff]
    %v209 = vld [vmem:[#allocation5 + $0x190] sm:$0xff]
    %v210 = vld [vmem:[#allocation5 + $0x198] sm:$0xff]
    %v211 = vld [vmem:[#allocation5 + $0x1a0] sm:$0xff]
    %v212 = vld [vmem:[#allocation5 + $0x1a8] sm:$0xff]
    %v213 = vld [vmem:[#allocation5 + $0x1b0] sm:$0xff]
    %v214 = vld [vmem:[#allocation5 + $0x1b8] sm:$0xff]
    %v215 = vld [vmem:[#allocation5 + $0x1c0] sm:$0xff]
    %v216 = vld [vmem:[#allocation5 + $0x1c8] sm:$0xff]
    %v217 = vld [vmem:[#allocation5 + $0x1d0] sm:$0xff]
    %v218 = vld [vmem:[#allocation5 + $0x1d8] sm:$0xff]
    %v219 = vld [vmem:[#allocation5 + $0x1e0] sm:$0xff]
    %v220 = vld [vmem:[#allocation5 + $0x1e8] sm:$0xff]
    %v221 = vld [vmem:[#allocation5 + $0x1f0] sm:$0xff]
    %v222 = vld [vmem:[#allocation5 + $0x1f8] sm:$0xff]
    %v223 = vld [vmem:[#allocation5 + $0x200] sm:$0xff]
    %v224 = vld [vmem:[#allocation5 + $0x208] sm:$0xff]
    %v225 = vld [vmem:[#allocation5 + $0x210] sm:$0xff]
    %v226 = vld [vmem:[#allocation5 + $0x218] sm:$0xff]
    %v227 = vld [vmem:[#allocation5 + $0x220] sm:$0xff]
    %v228 = vld [vmem:[#allocation5 + $0x228] sm:$0xff]
    %v229 = vld [vmem:[#allocation5 + $0x230] sm:$0xff]
    %v230 = vld [vmem:[#allocation5 + $0x238] sm:$0xff]
    %v231 = vld [vmem:[#allocation5 + $0x240] sm:$0xff]
    %v232 = vld [vmem:[#allocation5 + $0x248] sm:$0xff]
    %v233 = vld [vmem:[#allocation5 + $0x250] sm:$0xff]
    %v234 = vld [vmem:[#allocation5 + $0x258] sm:$0xff]
    %v235 = vld [vmem:[#allocation5 + $0x260] sm:$0xff]
    %v236 = vld [vmem:[#allocation5 + $0x268] sm:$0xff]
    %v237 = vld [vmem:[#allocation5 + $0x270] sm:$0xff]
    %v238 = vld [vmem:[#allocation5 + $0x278] sm:$0xff]
    %v239 = vld [vmem:[#allocation5 + $0x280] sm:$0xff]
    %v240 = vld [vmem:[#allocation5 + $0x288] sm:$0xff]
    %v241 = vld [vmem:[#allocation5 + $0x290] sm:$0xff]
    %v242 = vld [vmem:[#allocation5 + $0x298] sm:$0xff]
    %v243 = vld [vmem:[#allocation5 + $0x2a0] sm:$0xff]
    %v244 = vld [vmem:[#allocation5 + $0x2a8] sm:$0xff]
    %v245 = vld [vmem:[#allocation5 + $0x2b0] sm:$0xff]
    %v246 = vld [vmem:[#allocation5 + $0x2b8] sm:$0xff]
    %v247 = vld [vmem:[#allocation5 + $0x2c0] sm:$0xff]
    %v248 = vld [vmem:[#allocation5 + $0x2c8] sm:$0xff]
    %v249 = vld [vmem:[#allocation5 + $0x2d0] sm:$0xff]
    %v250 = vld [vmem:[#allocation5 + $0x2d8] sm:$0xff]
    %v251 = vld [vmem:[#allocation5 + $0x2e0] sm:$0xff]
    %v252 = vld [vmem:[#allocation5 + $0x2e8] sm:$0xff]
    %v253 = vld [vmem:[#allocation5 + $0x2f0] sm:$0xff]
    %v254 = vld [vmem:[#allocation5 + $0x2f8] sm:$0xff]
    %v255 = vld [vmem:[#allocation5 + $0x300] sm:$0xff]
    %v256 = vld [vmem:[#allocation5 + $0x308] sm:$0xff]
    %v257 = vld [vmem:[#allocation5 + $0x310] sm:$0xff]
    %v258 = vld [vmem:[#allocation5 + $0x318] sm:$0xff]
    %v259 = vld [vmem:[#allocation5 + $0x320] sm:$0xff]
    %v260 = vld [vmem:[#allocation5 + $0x328] sm:$0xff]
    %v261 = vld [vmem:[#allocation5 + $0x330] sm:$0xff]
    %v262 = vld [vmem:[#allocation5 + $0x338] sm:$0xff]
    %v263 = vld [vmem:[#allocation5 + $0x340] sm:$0xff]
    %v264 = vld [vmem:[#allocation5 + $0x348] sm:$0xff]
    %v265 = vld [vmem:[#allocation5 + $0x350] sm:$0xff]
    %v266 = vld [vmem:[#allocation5 + $0x358] sm:$0xff]
    %v267 = vld [vmem:[#allocation5 + $0x360] sm:$0xff]
    %v268 = vld [vmem:[#allocation5 + $0x368] sm:$0xff]
    %v269 = vld [vmem:[#allocation5 + $0x370] sm:$0xff]
    %v270 = vld [vmem:[#allocation5 + $0x378] sm:$0xff]
    %v271 = vld [vmem:[#allocation5 + $0x380] sm:$0xff]
    %v272 = vld [vmem:[#allocation5 + $0x388] sm:$0xff]
    %v273 = vld [vmem:[#allocation5 + $0x390] sm:$0xff]
    %v274 = vld [vmem:[#allocation5 + $0x398] sm:$0xff]
    %v275 = vld [vmem:[#allocation5 + $0x3a0] sm:$0xff]
    %v276 = vld [vmem:[#allocation5 + $0x3a8] sm:$0xff]
    %v277 = vld [vmem:[#allocation5 + $0x3b0] sm:$0xff]
    %v278 = vld [vmem:[#allocation5 + $0x3b8] sm:$0xff]
    %v279 = vld [vmem:[#allocation5 + $0x3c0] sm:$0xff]
    %v280 = vld [vmem:[#allocation5 + $0x3c8] sm:$0xff]
    %v281 = vld [vmem:[#allocation5 + $0x3d0] sm:$0xff]
    %v282 = vld [vmem:[#allocation5 + $0x3d8] sm:$0xff]
    %v283 = vld [vmem:[#allocation5 + $0x3e0] sm:$0xff]
    %v284 = vld [vmem:[#allocation5 + $0x3e8] sm:$0xff]
    %v285 = vld [vmem:[#allocation5 + $0x3f0] sm:$0xff]
    %v286 = vld [vmem:[#allocation5 + $0x3f8] sm:$0xff]
    %v287 = vld [vmem:[#allocation5 + $0x400] sm:$0xff]
    %v288 = vld [vmem:[#allocation5 + $0x408] sm:$0xff]
    %v289 = vld [vmem:[#allocation5 + $0x410] sm:$0xff]
    %v290 = vld [vmem:[#allocation5 + $0x418] sm:$0xff]
    %v291 = vld [vmem:[#allocation5 + $0x420] sm:$0xff]
    %v292 = vld [vmem:[#allocation5 + $0x428] sm:$0xff]
    %v293 = vld [vmem:[#allocation5 + $0x430] sm:$0xff]
    %v294 = vld [vmem:[#allocation5 + $0x438] sm:$0xff]
    %v295 = vld [vmem:[#allocation5 + $0x440] sm:$0xff]
    %v296 = vld [vmem:[#allocation5 + $0x448] sm:$0xff]
    %v297 = vld [vmem:[#allocation5 + $0x450] sm:$0xff]
    %v298 = vld [vmem:[#allocation5 + $0x458] sm:$0xff]
    %v299 = vld [vmem:[#allocation5 + $0x460] sm:$0xff]
    %v300 = vld [vmem:[#allocation5 + $0x468] sm:$0xff]
    %v301 = vld [vmem:[#allocation5 + $0x470] sm:$0xff]
    %v302 = vld [vmem:[#allocation5 + $0x478] sm:$0xff]
    %v303 = vld [vmem:[#allocation5 + $0x480] sm:$0xff]
    %v304 = vld [vmem:[#allocation5 + $0x488] sm:$0xff]
    %v305 = vld [vmem:[#allocation5 + $0x490] sm:$0xff]
    %v306 = vld [vmem:[#allocation5 + $0x498] sm:$0xff]
    %v307 = vld [vmem:[#allocation5 + $0x4a0] sm:$0xff]
    %v308 = vld [vmem:[#allocation5 + $0x4a8] sm:$0xff]
    %v309 = vld [vmem:[#allocation5 + $0x4b0] sm:$0xff]
    %v310 = vld [vmem:[#allocation5 + $0x4b8] sm:$0xff]
    %v311 = vld [vmem:[#allocation5 + $0x4c0] sm:$0xff]
    %v312 = vld [vmem:[#allocation5 + $0x4c8] sm:$0xff]
    %v313 = vld [vmem:[#allocation5 + $0x4d0] sm:$0xff]
    %v314 = vld [vmem:[#allocation5 + $0x4d8] sm:$0xff]
    %v315 = vld [vmem:[#allocation5 + $0x4e0] sm:$0xff]
    %v316 = vld [vmem:[#allocation5 + $0x4e8] sm:$0xff]
    %v317 = vld [vmem:[#allocation5 + $0x4f0] sm:$0xff]
    %v318 = vld [vmem:[#allocation5 + $0x4f8] sm:$0xff]
    %v319 = vld [vmem:[#allocation5 + $0x500] sm:$0xff]
    %v320 = vld [vmem:[#allocation5 + $0x508] sm:$0xff]
    %v321 = vld [vmem:[#allocation5 + $0x510] sm:$0xff]
    %v322 = vld [vmem:[#allocation5 + $0x518] sm:$0xff]
    %v323 = vld [vmem:[#allocation5 + $0x520] sm:$0xff]
    %v324 = vld [vmem:[#allocation5 + $0x528] sm:$0xff]
    %v325 = vld [vmem:[#allocation5 + $0x530] sm:$0xff]
    %v326 = vld [vmem:[#allocation5 + $0x538] sm:$0xff]
    %v327 = vld [vmem:[#allocation5 + $0x540] sm:$0xff]
    %v328 = vld [vmem:[#allocation5 + $0x548] sm:$0xff]
    %v329 = vld [vmem:[#allocation5 + $0x550] sm:$0xff]
    %v330 = vld [vmem:[#allocation5 + $0x558] sm:$0xff]
    %v331 = vld [vmem:[#allocation5 + $0x560] sm:$0xff]
    %v332 = vld [vmem:[#allocation5 + $0x568] sm:$0xff]
    %v333 = vld [vmem:[#allocation5 + $0x570] sm:$0xff]
    %v334 = vld [vmem:[#allocation5 + $0x578] sm:$0xff]
    %v335 = vld [vmem:[#allocation5 + $0x580] sm:$0xff]
    %v336 = vld [vmem:[#allocation5 + $0x588] sm:$0xff]
    %v337 = vld [vmem:[#allocation5 + $0x590] sm:$0xff]
    %v338 = vld [vmem:[#allocation5 + $0x598] sm:$0xff]
    %v339 = vld [vmem:[#allocation5 + $0x5a0] sm:$0xff]
    %v340 = vld [vmem:[#allocation5 + $0x5a8] sm:$0xff]
    %v341 = vld [vmem:[#allocation5 + $0x5b0] sm:$0xff]
    %v342 = vld [vmem:[#allocation5 + $0x5b8] sm:$0xff]
    %v343 = vld [vmem:[#allocation5 + $0x5c0] sm:$0xff]
    %v344 = vld [vmem:[#allocation5 + $0x5c8] sm:$0xff]
    %v345 = vld [vmem:[#allocation5 + $0x5d0] sm:$0xff]
    %v346 = vld [vmem:[#allocation5 + $0x5d8] sm:$0xff]
    %v347 = vld [vmem:[#allocation5 + $0x5e0] sm:$0xff]
    %v348 = vld [vmem:[#allocation5 + $0x5e8] sm:$0xff]
    %v349 = vld [vmem:[#allocation5 + $0x5f0] sm:$0xff]
    %v350 = vld [vmem:[#allocation5 + $0x5f8] sm:$0xff]
    %v351 = vld [vmem:[#allocation5 + $0x600] sm:$0xff]
    %v352 = vld [vmem:[#allocation5 + $0x608] sm:$0xff]
    %v353 = vld [vmem:[#allocation5 + $0x610] sm:$0xff]
    %v354 = vld [vmem:[#allocation5 + $0x618] sm:$0xff]
    %v355 = vld [vmem:[#allocation5 + $0x620] sm:$0xff]
    %v356 = vld [vmem:[#allocation5 + $0x628] sm:$0xff]
    %v357 = vld [vmem:[#allocation5 + $0x630] sm:$0xff]
    %v358 = vld [vmem:[#allocation5 + $0x638] sm:$0xff]
    %v359 = vld [vmem:[#allocation5 + $0x640] sm:$0xff]
    %v360 = vld [vmem:[#allocation5 + $0x648] sm:$0xff]
    %v361 = vld [vmem:[#allocation5 + $0x650] sm:$0xff]
    %v362 = vld [vmem:[#allocation5 + $0x658] sm:$0xff]
    %v363 = vld [vmem:[#allocation5 + $0x660] sm:$0xff]
    %v364 = vld [vmem:[#allocation5 + $0x668] sm:$0xff]
    %v365 = vld [vmem:[#allocation5 + $0x670] sm:$0xff]
    %v366 = vld [vmem:[#allocation5 + $0x678] sm:$0xff]
    %v367 = vld [vmem:[#allocation5 + $0x680] sm:$0xff]
    %v368 = vld [vmem:[#allocation5 + $0x688] sm:$0xff]
    %v369 = vld [vmem:[#allocation5 + $0x690] sm:$0xff]
    %v370 = vld [vmem:[#allocation5 + $0x698] sm:$0xff]
    %v371 = vld [vmem:[#allocation5 + $0x6a0] sm:$0xff]
    %v372 = vld [vmem:[#allocation5 + $0x6a8] sm:$0xff]
    %v373 = vld [vmem:[#allocation5 + $0x6b0] sm:$0xff]
    %v374 = vld [vmem:[#allocation5 + $0x6b8] sm:$0xff]
    %v375 = vld [vmem:[#allocation5 + $0x6c0] sm:$0xff]
    %v376 = vld [vmem:[#allocation5 + $0x6c8] sm:$0xff]
    %v377 = vld [vmem:[#allocation5 + $0x6d0] sm:$0xff]
    %v378 = vld [vmem:[#allocation5 + $0x6d8] sm:$0xff]
    %v379 = vld [vmem:[#allocation5 + $0x6e0] sm:$0xff]
    %v380 = vld [vmem:[#allocation5 + $0x6e8] sm:$0xff]
    %v381 = vld [vmem:[#allocation5 + $0x6f0] sm:$0xff]
    %v382 = vld [vmem:[#allocation5 + $0x6f8] sm:$0xff]
    %v383 = vld [vmem:[#allocation5 + $0x700] sm:$0xff]
    %v384 = vld [vmem:[#allocation5 + $0x708] sm:$0xff]
    %v385 = vld [vmem:[#allocation5 + $0x710] sm:$0xff]
    %v386 = vld [vmem:[#allocation5 + $0x718] sm:$0xff]
    %v387 = vld [vmem:[#allocation5 + $0x720] sm:$0xff]
    %v388 = vld [vmem:[#allocation5 + $0x728] sm:$0xff]
    %v389 = vld [vmem:[#allocation5 + $0x730] sm:$0xff]
    %v390 = vld [vmem:[#allocation5 + $0x738] sm:$0xff]
    %v391 = vld [vmem:[#allocation5 + $0x740] sm:$0xff]
    %v392 = vld [vmem:[#allocation5 + $0x748] sm:$0xff]
    %v393 = vld [vmem:[#allocation5 + $0x750] sm:$0xff]
    %v394 = vld [vmem:[#allocation5 + $0x758] sm:$0xff]
    %v395 = vld [vmem:[#allocation5 + $0x760] sm:$0xff]
    %v396 = vld [vmem:[#allocation5 + $0x768] sm:$0xff]
    %v397 = vld [vmem:[#allocation5 + $0x770] sm:$0xff]
    %v398 = vld [vmem:[#allocation5 + $0x778] sm:$0xff]
    %v399 = vld [vmem:[#allocation5 + $0x780] sm:$0xff]
    %v400 = vld [vmem:[#allocation5 + $0x788] sm:$0xff]
    %v401 = vld [vmem:[#allocation5 + $0x790] sm:$0xff]
    %v402 = vld [vmem:[#allocation5 + $0x798] sm:$0xff]
    %v403 = vld [vmem:[#allocation5 + $0x7a0] sm:$0xff]
    %v404 = vld [vmem:[#allocation5 + $0x7a8] sm:$0xff]
    %v405 = vld [vmem:[#allocation5 + $0x7b0] sm:$0xff]
    %v406 = vld [vmem:[#allocation5 + $0x7b8] sm:$0xff]
    %v407 = vld [vmem:[#allocation5 + $0x7c0] sm:$0xff]
    %v408 = vld [vmem:[#allocation5 + $0x7c8] sm:$0xff]
    %v409 = vld [vmem:[#allocation5 + $0x7d0] sm:$0xff]
    %v410 = vld [vmem:[#allocation5 + $0x7d8] sm:$0xff]
    %v411 = vld [vmem:[#allocation5 + $0x7e0] sm:$0xff]
    %v412 = vld [vmem:[#allocation5 + $0x7e8] sm:$0xff]
    %v413 = vld [vmem:[#allocation5 + $0x7f0] sm:$0xff]
    %v414 = vld [vmem:[#allocation5 + $0x7f8] sm:$0xff]
    %v415 = vld [vmem:[#allocation7] sm:$0xf]
    %v417 = vlaneseq
    %v418 = vshrl.u32 %v417, 7
    %v419 = vsub.s32 0, %v418
    %v420 = vrot.slane %v415, %v419
    %v421 = vlaneseq
    %v422 = vshrl.u32 %v421, 7
    %v423 = vsub.s32 1, %v422
    %v424 = vrot.slane %v415, %v423
    %v425 = vlaneseq
    %v426 = vshrl.u32 %v425, 7
    %v427 = vsub.s32 2, %v426
    %v428 = vrot.slane %v415, %v427
    %v429 = vlaneseq
    %v430 = vshrl.u32 %v429, 7
    %v431 = vsub.s32 3, %v430
    %v432 = vrot.slane %v415, %v431
    %v693 = vunpack.c.l.b16 %v159
    %v694 = vunpack.c.h.b16 %v159
    %v695 = vunpack.c.l.b16 %v160
    %v696 = vunpack.c.h.b16 %v160
    %v697 = vunpack.c.l.b16 %v161
    %v698 = vunpack.c.h.b16 %v161
    %v699 = vunpack.c.l.b16 %v162
    %v700 = vunpack.c.h.b16 %v162
    %v701 = vunpack.c.l.b16 %v163
    %v702 = vunpack.c.h.b16 %v163
    %v703 = vunpack.c.l.b16 %v164
    %v704 = vunpack.c.h.b16 %v164
    %v705 = vunpack.c.l.b16 %v165
    %v706 = vunpack.c.h.b16 %v165
    %v707 = vunpack.c.l.b16 %v166
    %v708 = vunpack.c.h.b16 %v166
    %v709 = vunpack.c.l.b16 %v167
    %v710 = vunpack.c.h.b16 %v167
    %v711 = vunpack.c.l.b16 %v168
    %v712 = vunpack.c.h.b16 %v168
    %v713 = vunpack.c.l.b16 %v169
    %v714 = vunpack.c.h.b16 %v169
    %v715 = vunpack.c.l.b16 %v170
    %v716 = vunpack.c.h.b16 %v170
    %v717 = vunpack.c.l.b16 %v171
    %v718 = vunpack.c.h.b16 %v171
    %v719 = vunpack.c.l.b16 %v172
    %v720 = vunpack.c.h.b16 %v172
    %v721 = vunpack.c.l.b16 %v173
    %v722 = vunpack.c.h.b16 %v173
    %v723 = vunpack.c.l.b16 %v174
    %v724 = vunpack.c.h.b16 %v174
    %v725 = vunpack.c.l.b16 %v175
    %v726 = vunpack.c.h.b16 %v175
    %v727 = vunpack.c.l.b16 %v176
    %v728 = vunpack.c.h.b16 %v176
    %v729 = vunpack.c.l.b16 %v177
    %v730 = vunpack.c.h.b16 %v177
    %v731 = vunpack.c.l.b16 %v178
    %v732 = vunpack.c.h.b16 %v178
    %v733 = vunpack.c.l.b16 %v179
    %v734 = vunpack.c.h.b16 %v179
    %v735 = vunpack.c.l.b16 %v180
    %v736 = vunpack.c.h.b16 %v180
    %v737 = vunpack.c.l.b16 %v181
    %v738 = vunpack.c.h.b16 %v181
    %v739 = vunpack.c.l.b16 %v182
    %v740 = vunpack.c.h.b16 %v182
    %v741 = vunpack.c.l.b16 %v183
    %v742 = vunpack.c.h.b16 %v183
    %v743 = vunpack.c.l.b16 %v184
    %v744 = vunpack.c.h.b16 %v184
    %v745 = vunpack.c.l.b16 %v185
    %v746 = vunpack.c.h.b16 %v185
    %v747 = vunpack.c.l.b16 %v186
    %v748 = vunpack.c.h.b16 %v186
    %v749 = vunpack.c.l.b16 %v187
    %v750 = vunpack.c.h.b16 %v187
    %v751 = vunpack.c.l.b16 %v188
    %v752 = vunpack.c.h.b16 %v188
    %v753 = vunpack.c.l.b16 %v189
    %v754 = vunpack.c.h.b16 %v189
    %v755 = vunpack.c.l.b16 %v190
    %v756 = vunpack.c.h.b16 %v190
    %v757 = vunpack.c.l.b16 %v191
    %v758 = vunpack.c.h.b16 %v191
    %v759 = vunpack.c.l.b16 %v192
    %v760 = vunpack.c.h.b16 %v192
    %v761 = vunpack.c.l.b16 %v193
    %v762 = vunpack.c.h.b16 %v193
    %v763 = vunpack.c.l.b16 %v194
    %v764 = vunpack.c.h.b16 %v194
    %v765 = vunpack.c.l.b16 %v195
    %v766 = vunpack.c.h.b16 %v195
    %v767 = vunpack.c.l.b16 %v196
    %v768 = vunpack.c.h.b16 %v196
    %v769 = vunpack.c.l.b16 %v197
    %v770 = vunpack.c.h.b16 %v197
    %v771 = vunpack.c.l.b16 %v198
    %v772 = vunpack.c.h.b16 %v198
    %v773 = vunpack.c.l.b16 %v199
    %v774 = vunpack.c.h.b16 %v199
    %v775 = vunpack.c.l.b16 %v200
    %v776 = vunpack.c.h.b16 %v200
    %v777 = vunpack.c.l.b16 %v201
    %v778 = vunpack.c.h.b16 %v201
    %v779 = vunpack.c.l.b16 %v202
    %v780 = vunpack.c.h.b16 %v202
    %v781 = vunpack.c.l.b16 %v203
    %v782 = vunpack.c.h.b16 %v203
    %v783 = vunpack.c.l.b16 %v204
    %v784 = vunpack.c.h.b16 %v204
    %v785 = vunpack.c.l.b16 %v205
    %v786 = vunpack.c.h.b16 %v205
    %v787 = vunpack.c.l.b16 %v206
    %v788 = vunpack.c.h.b16 %v206
    %v789 = vunpack.c.l.b16 %v207
    %v790 = vunpack.c.h.b16 %v207
    %v791 = vunpack.c.l.b16 %v208
    %v792 = vunpack.c.h.b16 %v208
    %v793 = vunpack.c.l.b16 %v209
    %v794 = vunpack.c.h.b16 %v209
    %v795 = vunpack.c.l.b16 %v210
    %v796 = vunpack.c.h.b16 %v210
    %v797 = vunpack.c.l.b16 %v211
    %v798 = vunpack.c.h.b16 %v211
    %v799 = vunpack.c.l.b16 %v212
    %v800 = vunpack.c.h.b16 %v212
    %v801 = vunpack.c.l.b16 %v213
    %v802 = vunpack.c.h.b16 %v213
    %v803 = vunpack.c.l.b16 %v214
    %v804 = vunpack.c.h.b16 %v214
    %v805 = vunpack.c.l.b16 %v215
    %v806 = vunpack.c.h.b16 %v215
    %v807 = vunpack.c.l.b16 %v216
    %v808 = vunpack.c.h.b16 %v216
    %v809 = vunpack.c.l.b16 %v217
    %v810 = vunpack.c.h.b16 %v217
    %v811 = vunpack.c.l.b16 %v218
    %v812 = vunpack.c.h.b16 %v218
    %v813 = vunpack.c.l.b16 %v219
    %v814 = vunpack.c.h.b16 %v219
    %v815 = vunpack.c.l.b16 %v220
    %v816 = vunpack.c.h.b16 %v220
    %v817 = vunpack.c.l.b16 %v221
    %v818 = vunpack.c.h.b16 %v221
    %v819 = vunpack.c.l.b16 %v222
    %v820 = vunpack.c.h.b16 %v222
    %v821 = vunpack.c.l.b16 %v223
    %v822 = vunpack.c.h.b16 %v223
    %v823 = vunpack.c.l.b16 %v224
    %v824 = vunpack.c.h.b16 %v224
    %v825 = vunpack.c.l.b16 %v225
    %v826 = vunpack.c.h.b16 %v225
    %v827 = vunpack.c.l.b16 %v226
    %v828 = vunpack.c.h.b16 %v226
    %v829 = vunpack.c.l.b16 %v227
    %v830 = vunpack.c.h.b16 %v227
    %v831 = vunpack.c.l.b16 %v228
    %v832 = vunpack.c.h.b16 %v228
    %v833 = vunpack.c.l.b16 %v229
    %v834 = vunpack.c.h.b16 %v229
    %v835 = vunpack.c.l.b16 %v230
    %v836 = vunpack.c.h.b16 %v230
    %v837 = vunpack.c.l.b16 %v231
    %v838 = vunpack.c.h.b16 %v231
    %v839 = vunpack.c.l.b16 %v232
    %v840 = vunpack.c.h.b16 %v232
    %v841 = vunpack.c.l.b16 %v233
    %v842 = vunpack.c.h.b16 %v233
    %v843 = vunpack.c.l.b16 %v234
    %v844 = vunpack.c.h.b16 %v234
    %v845 = vunpack.c.l.b16 %v235
    %v846 = vunpack.c.h.b16 %v235
    %v847 = vunpack.c.l.b16 %v236
    %v848 = vunpack.c.h.b16 %v236
    %v849 = vunpack.c.l.b16 %v237
    %v850 = vunpack.c.h.b16 %v237
    %v851 = vunpack.c.l.b16 %v238
    %v852 = vunpack.c.h.b16 %v238
    %v853 = vunpack.c.l.b16 %v239
    %v854 = vunpack.c.h.b16 %v239
    %v855 = vunpack.c.l.b16 %v240
    %v856 = vunpack.c.h.b16 %v240
    %v857 = vunpack.c.l.b16 %v241
    %v858 = vunpack.c.h.b16 %v241
    %v859 = vunpack.c.l.b16 %v242
    %v860 = vunpack.c.h.b16 %v242
    %v861 = vunpack.c.l.b16 %v243
    %v862 = vunpack.c.h.b16 %v243
    %v863 = vunpack.c.l.b16 %v244
    %v864 = vunpack.c.h.b16 %v244
    %v865 = vunpack.c.l.b16 %v245
    %v866 = vunpack.c.h.b16 %v245
    %v867 = vunpack.c.l.b16 %v246
    %v868 = vunpack.c.h.b16 %v246
    %v869 = vunpack.c.l.b16 %v247
    %v870 = vunpack.c.h.b16 %v247
    %v871 = vunpack.c.l.b16 %v248
    %v872 = vunpack.c.h.b16 %v248
    %v873 = vunpack.c.l.b16 %v249
    %v874 = vunpack.c.h.b16 %v249
    %v875 = vunpack.c.l.b16 %v250
    %v876 = vunpack.c.h.b16 %v250
    %v877 = vunpack.c.l.b16 %v251
    %v878 = vunpack.c.h.b16 %v251
    %v879 = vunpack.c.l.b16 %v252
    %v880 = vunpack.c.h.b16 %v252
    %v881 = vunpack.c.l.b16 %v253
    %v882 = vunpack.c.h.b16 %v253
    %v883 = vunpack.c.l.b16 %v254
    %v884 = vunpack.c.h.b16 %v254
    %v885 = vunpack.c.l.b16 %v255
    %v886 = vunpack.c.h.b16 %v255
    %v887 = vunpack.c.l.b16 %v256
    %v888 = vunpack.c.h.b16 %v256
    %v889 = vunpack.c.l.b16 %v257
    %v890 = vunpack.c.h.b16 %v257
    %v891 = vunpack.c.l.b16 %v258
    %v892 = vunpack.c.h.b16 %v258
    %v893 = vunpack.c.l.b16 %v259
    %v894 = vunpack.c.h.b16 %v259
    %v895 = vunpack.c.l.b16 %v260
    %v896 = vunpack.c.h.b16 %v260
    %v897 = vunpack.c.l.b16 %v261
    %v898 = vunpack.c.h.b16 %v261
    %v899 = vunpack.c.l.b16 %v262
    %v900 = vunpack.c.h.b16 %v262
    %v901 = vunpack.c.l.b16 %v263
    %v902 = vunpack.c.h.b16 %v263
    %v903 = vunpack.c.l.b16 %v264
    %v904 = vunpack.c.h.b16 %v264
    %v905 = vunpack.c.l.b16 %v265
    %v906 = vunpack.c.h.b16 %v265
    %v907 = vunpack.c.l.b16 %v266
    %v908 = vunpack.c.h.b16 %v266
    %v909 = vunpack.c.l.b16 %v267
    %v910 = vunpack.c.h.b16 %v267
    %v911 = vunpack.c.l.b16 %v268
    %v912 = vunpack.c.h.b16 %v268
    %v913 = vunpack.c.l.b16 %v269
    %v914 = vunpack.c.h.b16 %v269
    %v915 = vunpack.c.l.b16 %v270
    %v916 = vunpack.c.h.b16 %v270
    %v917 = vunpack.c.l.b16 %v271
    %v918 = vunpack.c.h.b16 %v271
    %v919 = vunpack.c.l.b16 %v272
    %v920 = vunpack.c.h.b16 %v272
    %v921 = vunpack.c.l.b16 %v273
    %v922 = vunpack.c.h.b16 %v273
    %v923 = vunpack.c.l.b16 %v274
    %v924 = vunpack.c.h.b16 %v274
    %v925 = vunpack.c.l.b16 %v275
    %v926 = vunpack.c.h.b16 %v275
    %v927 = vunpack.c.l.b16 %v276
    %v928 = vunpack.c.h.b16 %v276
    %v929 = vunpack.c.l.b16 %v277
    %v930 = vunpack.c.h.b16 %v277
    %v931 = vunpack.c.l.b16 %v278
    %v932 = vunpack.c.h.b16 %v278
    %v933 = vunpack.c.l.b16 %v279
    %v934 = vunpack.c.h.b16 %v279
    %v935 = vunpack.c.l.b16 %v280
    %v936 = vunpack.c.h.b16 %v280
    %v937 = vunpack.c.l.b16 %v281
    %v938 = vunpack.c.h.b16 %v281
    %v939 = vunpack.c.l.b16 %v282
    %v940 = vunpack.c.h.b16 %v282
    %v941 = vunpack.c.l.b16 %v283
    %v942 = vunpack.c.h.b16 %v283
    %v943 = vunpack.c.l.b16 %v284
    %v944 = vunpack.c.h.b16 %v284
    %v945 = vunpack.c.l.b16 %v285
    %v946 = vunpack.c.h.b16 %v285
    %v947 = vunpack.c.l.b16 %v286
    %v948 = vunpack.c.h.b16 %v286
    %v949 = vunpack.c.l.b16 %v287
    %v950 = vunpack.c.h.b16 %v287
    %v951 = vunpack.c.l.b16 %v288
    %v952 = vunpack.c.h.b16 %v288
    %v953 = vunpack.c.l.b16 %v289
    %v954 = vunpack.c.h.b16 %v289
    %v955 = vunpack.c.l.b16 %v290
    %v956 = vunpack.c.h.b16 %v290
    %v957 = vunpack.c.l.b16 %v291
    %v958 = vunpack.c.h.b16 %v291
    %v959 = vunpack.c.l.b16 %v292
    %v960 = vunpack.c.h.b16 %v292
    %v961 = vunpack.c.l.b16 %v293
    %v962 = vunpack.c.h.b16 %v293
    %v963 = vunpack.c.l.b16 %v294
    %v964 = vunpack.c.h.b16 %v294
    %v965 = vunpack.c.l.b16 %v295
    %v966 = vunpack.c.h.b16 %v295
    %v967 = vunpack.c.l.b16 %v296
    %v968 = vunpack.c.h.b16 %v296
    %v969 = vunpack.c.l.b16 %v297
    %v970 = vunpack.c.h.b16 %v297
    %v971 = vunpack.c.l.b16 %v298
    %v972 = vunpack.c.h.b16 %v298
    %v973 = vunpack.c.l.b16 %v299
    %v974 = vunpack.c.h.b16 %v299
    %v975 = vunpack.c.l.b16 %v300
    %v976 = vunpack.c.h.b16 %v300
    %v977 = vunpack.c.l.b16 %v301
    %v978 = vunpack.c.h.b16 %v301
    %v979 = vunpack.c.l.b16 %v302
    %v980 = vunpack.c.h.b16 %v302
    %v981 = vunpack.c.l.b16 %v303
    %v982 = vunpack.c.h.b16 %v303
    %v983 = vunpack.c.l.b16 %v304
    %v984 = vunpack.c.h.b16 %v304
    %v985 = vunpack.c.l.b16 %v305
    %v986 = vunpack.c.h.b16 %v305
    %v987 = vunpack.c.l.b16 %v306
    %v988 = vunpack.c.h.b16 %v306
    %v989 = vunpack.c.l.b16 %v307
    %v990 = vunpack.c.h.b16 %v307
    %v991 = vunpack.c.l.b16 %v308
    %v992 = vunpack.c.h.b16 %v308
    %v993 = vunpack.c.l.b16 %v309
    %v994 = vunpack.c.h.b16 %v309
    %v995 = vunpack.c.l.b16 %v310
    %v996 = vunpack.c.h.b16 %v310
    %v997 = vunpack.c.l.b16 %v311
    %v998 = vunpack.c.h.b16 %v311
    %v999 = vunpack.c.l.b16 %v312
    %v1000 = vunpack.c.h.b16 %v312
    %v1001 = vunpack.c.l.b16 %v313
    %v1002 = vunpack.c.h.b16 %v313
    %v1003 = vunpack.c.l.b16 %v314
    %v1004 = vunpack.c.h.b16 %v314
    %v1005 = vunpack.c.l.b16 %v315
    %v1006 = vunpack.c.h.b16 %v315
    %v1007 = vunpack.c.l.b16 %v316
    %v1008 = vunpack.c.h.b16 %v316
    %v1009 = vunpack.c.l.b16 %v317
    %v1010 = vunpack.c.h.b16 %v317
    %v1011 = vunpack.c.l.b16 %v318
    %v1012 = vunpack.c.h.b16 %v318
    %v1013 = vunpack.c.l.b16 %v319
    %v1014 = vunpack.c.h.b16 %v319
    %v1015 = vunpack.c.l.b16 %v320
    %v1016 = vunpack.c.h.b16 %v320
    %v1017 = vunpack.c.l.b16 %v321
    %v1018 = vunpack.c.h.b16 %v321
    %v1019 = vunpack.c.l.b16 %v322
    %v1020 = vunpack.c.h.b16 %v322
    %v1021 = vunpack.c.l.b16 %v323
    %v1022 = vunpack.c.h.b16 %v323
    %v1023 = vunpack.c.l.b16 %v324
    %v1024 = vunpack.c.h.b16 %v324
    %v1025 = vunpack.c.l.b16 %v325
    %v1026 = vunpack.c.h.b16 %v325
    %v1027 = vunpack.c.l.b16 %v326
    %v1028 = vunpack.c.h.b16 %v326
    %v1029 = vunpack.c.l.b16 %v327
    %v1030 = vunpack.c.h.b16 %v327
    %v1031 = vunpack.c.l.b16 %v328
    %v1032 = vunpack.c.h.b16 %v328
    %v1033 = vunpack.c.l.b16 %v329
    %v1034 = vunpack.c.h.b16 %v329
    %v1035 = vunpack.c.l.b16 %v330
    %v1036 = vunpack.c.h.b16 %v330
    %v1037 = vunpack.c.l.b16 %v331
    %v1038 = vunpack.c.h.b16 %v331
    %v1039 = vunpack.c.l.b16 %v332
    %v1040 = vunpack.c.h.b16 %v332
    %v1041 = vunpack.c.l.b16 %v333
    %v1042 = vunpack.c.h.b16 %v333
    %v1043 = vunpack.c.l.b16 %v334
    %v1044 = vunpack.c.h.b16 %v334
    %v1045 = vunpack.c.l.b16 %v335
    %v1046 = vunpack.c.h.b16 %v335
    %v1047 = vunpack.c.l.b16 %v336
    %v1048 = vunpack.c.h.b16 %v336
    %v1049 = vunpack.c.l.b16 %v337
    %v1050 = vunpack.c.h.b16 %v337
    %v1051 = vunpack.c.l.b16 %v338
    %v1052 = vunpack.c.h.b16 %v338
    %v1053 = vunpack.c.l.b16 %v339
    %v1054 = vunpack.c.h.b16 %v339
    %v1055 = vunpack.c.l.b16 %v340
    %v1056 = vunpack.c.h.b16 %v340
    %v1057 = vunpack.c.l.b16 %v341
    %v1058 = vunpack.c.h.b16 %v341
    %v1059 = vunpack.c.l.b16 %v342
    %v1060 = vunpack.c.h.b16 %v342
    %v1061 = vunpack.c.l.b16 %v343
    %v1062 = vunpack.c.h.b16 %v343
    %v1063 = vunpack.c.l.b16 %v344
    %v1064 = vunpack.c.h.b16 %v344
    %v1065 = vunpack.c.l.b16 %v345
    %v1066 = vunpack.c.h.b16 %v345
    %v1067 = vunpack.c.l.b16 %v346
    %v1068 = vunpack.c.h.b16 %v346
    %v1069 = vunpack.c.l.b16 %v347
    %v1070 = vunpack.c.h.b16 %v347
    %v1071 = vunpack.c.l.b16 %v348
    %v1072 = vunpack.c.h.b16 %v348
    %v1073 = vunpack.c.l.b16 %v349
    %v1074 = vunpack.c.h.b16 %v349
    %v1075 = vunpack.c.l.b16 %v350
    %v1076 = vunpack.c.h.b16 %v350
    %v1077 = vunpack.c.l.b16 %v351
    %v1078 = vunpack.c.h.b16 %v351
    %v1079 = vunpack.c.l.b16 %v352
    %v1080 = vunpack.c.h.b16 %v352
    %v1081 = vunpack.c.l.b16 %v353
    %v1082 = vunpack.c.h.b16 %v353
    %v1083 = vunpack.c.l.b16 %v354
    %v1084 = vunpack.c.h.b16 %v354
    %v1085 = vunpack.c.l.b16 %v355
    %v1086 = vunpack.c.h.b16 %v355
    %v1087 = vunpack.c.l.b16 %v356
    %v1088 = vunpack.c.h.b16 %v356
    %v1089 = vunpack.c.l.b16 %v357
    %v1090 = vunpack.c.h.b16 %v357
    %v1091 = vunpack.c.l.b16 %v358
    %v1092 = vunpack.c.h.b16 %v358
    %v1093 = vunpack.c.l.b16 %v359
    %v1094 = vunpack.c.h.b16 %v359
    %v1095 = vunpack.c.l.b16 %v360
    %v1096 = vunpack.c.h.b16 %v360
    %v1097 = vunpack.c.l.b16 %v361
    %v1098 = vunpack.c.h.b16 %v361
    %v1099 = vunpack.c.l.b16 %v362
    %v1100 = vunpack.c.h.b16 %v362
    %v1101 = vunpack.c.l.b16 %v363
    %v1102 = vunpack.c.h.b16 %v363
    %v1103 = vunpack.c.l.b16 %v364
    %v1104 = vunpack.c.h.b16 %v364
    %v1105 = vunpack.c.l.b16 %v365
    %v1106 = vunpack.c.h.b16 %v365
    %v1107 = vunpack.c.l.b16 %v366
    %v1108 = vunpack.c.h.b16 %v366
    %v1109 = vunpack.c.l.b16 %v367
    %v1110 = vunpack.c.h.b16 %v367
    %v1111 = vunpack.c.l.b16 %v368
    %v1112 = vunpack.c.h.b16 %v368
    %v1113 = vunpack.c.l.b16 %v369
    %v1114 = vunpack.c.h.b16 %v369
    %v1115 = vunpack.c.l.b16 %v370
    %v1116 = vunpack.c.h.b16 %v370
    %v1117 = vunpack.c.l.b16 %v371
    %v1118 = vunpack.c.h.b16 %v371
    %v1119 = vunpack.c.l.b16 %v372
    %v1120 = vunpack.c.h.b16 %v372
    %v1121 = vunpack.c.l.b16 %v373
    %v1122 = vunpack.c.h.b16 %v373
    %v1123 = vunpack.c.l.b16 %v374
    %v1124 = vunpack.c.h.b16 %v374
    %v1125 = vunpack.c.l.b16 %v375
    %v1126 = vunpack.c.h.b16 %v375
    %v1127 = vunpack.c.l.b16 %v376
    %v1128 = vunpack.c.h.b16 %v376
    %v1129 = vunpack.c.l.b16 %v377
    %v1130 = vunpack.c.h.b16 %v377
    %v1131 = vunpack.c.l.b16 %v378
    %v1132 = vunpack.c.h.b16 %v378
    %v1133 = vunpack.c.l.b16 %v379
    %v1134 = vunpack.c.h.b16 %v379
    %v1135 = vunpack.c.l.b16 %v380
    %v1136 = vunpack.c.h.b16 %v380
    %v1137 = vunpack.c.l.b16 %v381
    %v1138 = vunpack.c.h.b16 %v381
    %v1139 = vunpack.c.l.b16 %v382
    %v1140 = vunpack.c.h.b16 %v382
    %v1141 = vunpack.c.l.b16 %v383
    %v1142 = vunpack.c.h.b16 %v383
    %v1143 = vunpack.c.l.b16 %v384
    %v1144 = vunpack.c.h.b16 %v384
    %v1145 = vunpack.c.l.b16 %v385
    %v1146 = vunpack.c.h.b16 %v385
    %v1147 = vunpack.c.l.b16 %v386
    %v1148 = vunpack.c.h.b16 %v386
    %v1149 = vunpack.c.l.b16 %v387
    %v1150 = vunpack.c.h.b16 %v387
    %v1151 = vunpack.c.l.b16 %v388
    %v1152 = vunpack.c.h.b16 %v388
    %v1153 = vunpack.c.l.b16 %v389
    %v1154 = vunpack.c.h.b16 %v389
    %v1155 = vunpack.c.l.b16 %v390
    %v1156 = vunpack.c.h.b16 %v390
    %v1157 = vunpack.c.l.b16 %v391
    %v1158 = vunpack.c.h.b16 %v391
    %v1159 = vunpack.c.l.b16 %v392
    %v1160 = vunpack.c.h.b16 %v392
    %v1161 = vunpack.c.l.b16 %v393
    %v1162 = vunpack.c.h.b16 %v393
    %v1163 = vunpack.c.l.b16 %v394
    %v1164 = vunpack.c.h.b16 %v394
    %v1165 = vunpack.c.l.b16 %v395
    %v1166 = vunpack.c.h.b16 %v395
    %v1167 = vunpack.c.l.b16 %v396
    %v1168 = vunpack.c.h.b16 %v396
    %v1169 = vunpack.c.l.b16 %v397
    %v1170 = vunpack.c.h.b16 %v397
    %v1171 = vunpack.c.l.b16 %v398
    %v1172 = vunpack.c.h.b16 %v398
    %v1173 = vunpack.c.l.b16 %v399
    %v1174 = vunpack.c.h.b16 %v399
    %v1175 = vunpack.c.l.b16 %v400
    %v1176 = vunpack.c.h.b16 %v400
    %v1177 = vunpack.c.l.b16 %v401
    %v1178 = vunpack.c.h.b16 %v401
    %v1179 = vunpack.c.l.b16 %v402
    %v1180 = vunpack.c.h.b16 %v402
    %v1181 = vunpack.c.l.b16 %v403
    %v1182 = vunpack.c.h.b16 %v403
    %v1183 = vunpack.c.l.b16 %v404
    %v1184 = vunpack.c.h.b16 %v404
    %v1185 = vunpack.c.l.b16 %v405
    %v1186 = vunpack.c.h.b16 %v405
    %v1187 = vunpack.c.l.b16 %v406
    %v1188 = vunpack.c.h.b16 %v406
    %v1189 = vunpack.c.l.b16 %v407
    %v1190 = vunpack.c.h.b16 %v407
    %v1191 = vunpack.c.l.b16 %v408
    %v1192 = vunpack.c.h.b16 %v408
    %v1193 = vunpack.c.l.b16 %v409
    %v1194 = vunpack.c.h.b16 %v409
    %v1195 = vunpack.c.l.b16 %v410
    %v1196 = vunpack.c.h.b16 %v410
    %v1197 = vunpack.c.l.b16 %v411
    %v1198 = vunpack.c.h.b16 %v411
    %v1199 = vunpack.c.l.b16 %v412
    %v1200 = vunpack.c.h.b16 %v412
    %v1201 = vunpack.c.l.b16 %v413
    %v1202 = vunpack.c.h.b16 %v413
    %v1203 = vunpack.c.l.b16 %v414
    %v1204 = vunpack.c.h.b16 %v414
    %v1205 = vpack.c.b16 %v697, %v693
    %v1206 = vpack.c.b16 %v698, %v694
    %v1207 = vpack.c.b16 %v699, %v695
    %v1208 = vpack.c.b16 %v700, %v696
    %v1209 = vpack.c.b16 %v705, %v701
    %v1210 = vpack.c.b16 %v706, %v702
    %v1211 = vpack.c.b16 %v707, %v703
    %v1212 = vpack.c.b16 %v708, %v704
    %v1213 = vpack.c.b16 %v713, %v709
    %v1214 = vpack.c.b16 %v714, %v710
    %v1215 = vpack.c.b16 %v715, %v711
    %v1216 = vpack.c.b16 %v716, %v712
    %v1217 = vpack.c.b16 %v721, %v717
    %v1218 = vpack.c.b16 %v722, %v718
    %v1219 = vpack.c.b16 %v723, %v719
    %v1220 = vpack.c.b16 %v724, %v720
    %v1221 = vpack.c.b16 %v729, %v725
    %v1222 = vpack.c.b16 %v730, %v726
    %v1223 = vpack.c.b16 %v731, %v727
    %v1224 = vpack.c.b16 %v732, %v728
    %v1225 = vpack.c.b16 %v737, %v733
    %v1226 = vpack.c.b16 %v738, %v734
    %v1227 = vpack.c.b16 %v739, %v735
    %v1228 = vpack.c.b16 %v740, %v736
    %v1229 = vpack.c.b16 %v745, %v741
    %v1230 = vpack.c.b16 %v746, %v742
    %v1231 = vpack.c.b16 %v747, %v743
    %v1232 = vpack.c.b16 %v748, %v744
    %v1233 = vpack.c.b16 %v753, %v749
    %v1234 = vpack.c.b16 %v754, %v750
    %v1235 = vpack.c.b16 %v755, %v751
    %v1236 = vpack.c.b16 %v756, %v752
    %v1237 = vpack.c.b16 %v761, %v757
    %v1238 = vpack.c.b16 %v762, %v758
    %v1239 = vpack.c.b16 %v763, %v759
    %v1240 = vpack.c.b16 %v764, %v760
    %v1241 = vpack.c.b16 %v769, %v765
    %v1242 = vpack.c.b16 %v770, %v766
    %v1243 = vpack.c.b16 %v771, %v767
    %v1244 = vpack.c.b16 %v772, %v768
    %v1245 = vpack.c.b16 %v777, %v773
    %v1246 = vpack.c.b16 %v778, %v774
    %v1247 = vpack.c.b16 %v779, %v775
    %v1248 = vpack.c.b16 %v780, %v776
    %v1249 = vpack.c.b16 %v785, %v781
    %v1250 = vpack.c.b16 %v786, %v782
    %v1251 = vpack.c.b16 %v787, %v783
    %v1252 = vpack.c.b16 %v788, %v784
    %v1253 = vpack.c.b16 %v793, %v789
    %v1254 = vpack.c.b16 %v794, %v790
    %v1255 = vpack.c.b16 %v795, %v791
    %v1256 = vpack.c.b16 %v796, %v792
    %v1257 = vpack.c.b16 %v801, %v797
    %v1258 = vpack.c.b16 %v802, %v798
    %v1259 = vpack.c.b16 %v803, %v799
    %v1260 = vpack.c.b16 %v804, %v800
    %v1261 = vpack.c.b16 %v809, %v805
    %v1262 = vpack.c.b16 %v810, %v806
    %v1263 = vpack.c.b16 %v811, %v807
    %v1264 = vpack.c.b16 %v812, %v808
    %v1265 = vpack.c.b16 %v817, %v813
    %v1266 = vpack.c.b16 %v818, %v814
    %v1267 = vpack.c.b16 %v819, %v815
    %v1268 = vpack.c.b16 %v820, %v816
    %v1269 = vpack.c.b16 %v825, %v821
    %v1270 = vpack.c.b16 %v826, %v822
    %v1271 = vpack.c.b16 %v827, %v823
    %v1272 = vpack.c.b16 %v828, %v824
    %v1273 = vpack.c.b16 %v833, %v829
    %v1274 = vpack.c.b16 %v834, %v830
    %v1275 = vpack.c.b16 %v835, %v831
    %v1276 = vpack.c.b16 %v836, %v832
    %v1277 = vpack.c.b16 %v841, %v837
    %v1278 = vpack.c.b16 %v842, %v838
    %v1279 = vpack.c.b16 %v843, %v839
    %v1280 = vpack.c.b16 %v844, %v840
    %v1281 = vpack.c.b16 %v849, %v845
    %v1282 = vpack.c.b16 %v850, %v846
    %v1283 = vpack.c.b16 %v851, %v847
    %v1284 = vpack.c.b16 %v852, %v848
    %v1285 = vpack.c.b16 %v857, %v853
    %v1286 = vpack.c.b16 %v858, %v854
    %v1287 = vpack.c.b16 %v859, %v855
    %v1288 = vpack.c.b16 %v860, %v856
    %v1289 = vpack.c.b16 %v865, %v861
    %v1290 = vpack.c.b16 %v866, %v862
    %v1291 = vpack.c.b16 %v867, %v863
    %v1292 = vpack.c.b16 %v868, %v864
    %v1293 = vpack.c.b16 %v873, %v869
    %v1294 = vpack.c.b16 %v874, %v870
    %v1295 = vpack.c.b16 %v875, %v871
    %v1296 = vpack.c.b16 %v876, %v872
    %v1297 = vpack.c.b16 %v881, %v877
    %v1298 = vpack.c.b16 %v882, %v878
    %v1299 = vpack.c.b16 %v883, %v879
    %v1300 = vpack.c.b16 %v884, %v880
    %v1301 = vpack.c.b16 %v889, %v885
    %v1302 = vpack.c.b16 %v890, %v886
    %v1303 = vpack.c.b16 %v891, %v887
    %v1304 = vpack.c.b16 %v892, %v888
    %v1305 = vpack.c.b16 %v897, %v893
    %v1306 = vpack.c.b16 %v898, %v894
    %v1307 = vpack.c.b16 %v899, %v895
    %v1308 = vpack.c.b16 %v900, %v896
    %v1309 = vpack.c.b16 %v905, %v901
    %v1310 = vpack.c.b16 %v906, %v902
    %v1311 = vpack.c.b16 %v907, %v903
    %v1312 = vpack.c.b16 %v908, %v904
    %v1313 = vpack.c.b16 %v913, %v909
    %v1314 = vpack.c.b16 %v914, %v910
    %v1315 = vpack.c.b16 %v915, %v911
    %v1316 = vpack.c.b16 %v916, %v912
    %v1317 = vpack.c.b16 %v921, %v917
    %v1318 = vpack.c.b16 %v922, %v918
    %v1319 = vpack.c.b16 %v923, %v919
    %v1320 = vpack.c.b16 %v924, %v920
    %v1321 = vpack.c.b16 %v929, %v925
    %v1322 = vpack.c.b16 %v930, %v926
    %v1323 = vpack.c.b16 %v931, %v927
    %v1324 = vpack.c.b16 %v932, %v928
    %v1325 = vpack.c.b16 %v937, %v933
    %v1326 = vpack.c.b16 %v938, %v934
    %v1327 = vpack.c.b16 %v939, %v935
    %v1328 = vpack.c.b16 %v940, %v936
    %v1329 = vpack.c.b16 %v945, %v941
    %v1330 = vpack.c.b16 %v946, %v942
    %v1331 = vpack.c.b16 %v947, %v943
    %v1332 = vpack.c.b16 %v948, %v944
    %v1333 = vpack.c.b16 %v953, %v949
    %v1334 = vpack.c.b16 %v954, %v950
    %v1335 = vpack.c.b16 %v955, %v951
    %v1336 = vpack.c.b16 %v956, %v952
    %v1337 = vpack.c.b16 %v961, %v957
    %v1338 = vpack.c.b16 %v962, %v958
    %v1339 = vpack.c.b16 %v963, %v959
    %v1340 = vpack.c.b16 %v964, %v960
    %v1341 = vpack.c.b16 %v969, %v965
    %v1342 = vpack.c.b16 %v970, %v966
    %v1343 = vpack.c.b16 %v971, %v967
    %v1344 = vpack.c.b16 %v972, %v968
    %v1345 = vpack.c.b16 %v977, %v973
    %v1346 = vpack.c.b16 %v978, %v974
    %v1347 = vpack.c.b16 %v979, %v975
    %v1348 = vpack.c.b16 %v980, %v976
    %v1349 = vpack.c.b16 %v985, %v981
    %v1350 = vpack.c.b16 %v986, %v982
    %v1351 = vpack.c.b16 %v987, %v983
    %v1352 = vpack.c.b16 %v988, %v984
    %v1353 = vpack.c.b16 %v993, %v989
    %v1354 = vpack.c.b16 %v994, %v990
    %v1355 = vpack.c.b16 %v995, %v991
    %v1356 = vpack.c.b16 %v996, %v992
    %v1357 = vpack.c.b16 %v1001, %v997
    %v1358 = vpack.c.b16 %v1002, %v998
    %v1359 = vpack.c.b16 %v1003, %v999
    %v1360 = vpack.c.b16 %v1004, %v1000
    %v1361 = vpack.c.b16 %v1009, %v1005
    %v1362 = vpack.c.b16 %v1010, %v1006
    %v1363 = vpack.c.b16 %v1011, %v1007
    %v1364 = vpack.c.b16 %v1012, %v1008
    %v1365 = vpack.c.b16 %v1017, %v1013
    %v1366 = vpack.c.b16 %v1018, %v1014
    %v1367 = vpack.c.b16 %v1019, %v1015
    %v1368 = vpack.c.b16 %v1020, %v1016
    %v1369 = vpack.c.b16 %v1025, %v1021
    %v1370 = vpack.c.b16 %v1026, %v1022
    %v1371 = vpack.c.b16 %v1027, %v1023
    %v1372 = vpack.c.b16 %v1028, %v1024
    %v1373 = vpack.c.b16 %v1033, %v1029
    %v1374 = vpack.c.b16 %v1034, %v1030
    %v1375 = vpack.c.b16 %v1035, %v1031
    %v1376 = vpack.c.b16 %v1036, %v1032
    %v1377 = vpack.c.b16 %v1041, %v1037
    %v1378 = vpack.c.b16 %v1042, %v1038
    %v1379 = vpack.c.b16 %v1043, %v1039
    %v1380 = vpack.c.b16 %v1044, %v1040
    %v1381 = vpack.c.b16 %v1049, %v1045
    %v1382 = vpack.c.b16 %v1050, %v1046
    %v1383 = vpack.c.b16 %v1051, %v1047
    %v1384 = vpack.c.b16 %v1052, %v1048
    %v1385 = vpack.c.b16 %v1057, %v1053
    %v1386 = vpack.c.b16 %v1058, %v1054
    %v1387 = vpack.c.b16 %v1059, %v1055
    %v1388 = vpack.c.b16 %v1060, %v1056
    %v1389 = vpack.c.b16 %v1065, %v1061
    %v1390 = vpack.c.b16 %v1066, %v1062
    %v1391 = vpack.c.b16 %v1067, %v1063
    %v1392 = vpack.c.b16 %v1068, %v1064
    %v1393 = vpack.c.b16 %v1073, %v1069
    %v1394 = vpack.c.b16 %v1074, %v1070
    %v1395 = vpack.c.b16 %v1075, %v1071
    %v1396 = vpack.c.b16 %v1076, %v1072
    %v1397 = vpack.c.b16 %v1081, %v1077
    %v1398 = vpack.c.b16 %v1082, %v1078
    %v1399 = vpack.c.b16 %v1083, %v1079
    %v1400 = vpack.c.b16 %v1084, %v1080
    %v1401 = vpack.c.b16 %v1089, %v1085
    %v1402 = vpack.c.b16 %v1090, %v1086
    %v1403 = vpack.c.b16 %v1091, %v1087
    %v1404 = vpack.c.b16 %v1092, %v1088
    %v1405 = vpack.c.b16 %v1097, %v1093
    %v1406 = vpack.c.b16 %v1098, %v1094
    %v1407 = vpack.c.b16 %v1099, %v1095
    %v1408 = vpack.c.b16 %v1100, %v1096
    %v1409 = vpack.c.b16 %v1105, %v1101
    %v1410 = vpack.c.b16 %v1106, %v1102
    %v1411 = vpack.c.b16 %v1107, %v1103
    %v1412 = vpack.c.b16 %v1108, %v1104
    %v1413 = vpack.c.b16 %v1113, %v1109
    %v1414 = vpack.c.b16 %v1114, %v1110
    %v1415 = vpack.c.b16 %v1115, %v1111
    %v1416 = vpack.c.b16 %v1116, %v1112
    %v1417 = vpack.c.b16 %v1121, %v1117
    %v1418 = vpack.c.b16 %v1122, %v1118
    %v1419 = vpack.c.b16 %v1123, %v1119
    %v1420 = vpack.c.b16 %v1124, %v1120
    %v1421 = vpack.c.b16 %v1129, %v1125
    %v1422 = vpack.c.b16 %v1130, %v1126
    %v1423 = vpack.c.b16 %v1131, %v1127
    %v1424 = vpack.c.b16 %v1132, %v1128
    %v1425 = vpack.c.b16 %v1137, %v1133
    %v1426 = vpack.c.b16 %v1138, %v1134
    %v1427 = vpack.c.b16 %v1139, %v1135
    %v1428 = vpack.c.b16 %v1140, %v1136
    %v1429 = vpack.c.b16 %v1145, %v1141
    %v1430 = vpack.c.b16 %v1146, %v1142
    %v1431 = vpack.c.b16 %v1147, %v1143
    %v1432 = vpack.c.b16 %v1148, %v1144
    %v1433 = vpack.c.b16 %v1153, %v1149
    %v1434 = vpack.c.b16 %v1154, %v1150
    %v1435 = vpack.c.b16 %v1155, %v1151
    %v1436 = vpack.c.b16 %v1156, %v1152
    %v1437 = vpack.c.b16 %v1161, %v1157
    %v1438 = vpack.c.b16 %v1162, %v1158
    %v1439 = vpack.c.b16 %v1163, %v1159
    %v1440 = vpack.c.b16 %v1164, %v1160
    %v1441 = vpack.c.b16 %v1169, %v1165
    %v1442 = vpack.c.b16 %v1170, %v1166
    %v1443 = vpack.c.b16 %v1171, %v1167
    %v1444 = vpack.c.b16 %v1172, %v1168
    %v1445 = vpack.c.b16 %v1177, %v1173
    %v1446 = vpack.c.b16 %v1178, %v1174
    %v1447 = vpack.c.b16 %v1179, %v1175
    %v1448 = vpack.c.b16 %v1180, %v1176
    %v1449 = vpack.c.b16 %v1185, %v1181
    %v1450 = vpack.c.b16 %v1186, %v1182
    %v1451 = vpack.c.b16 %v1187, %v1183
    %v1452 = vpack.c.b16 %v1188, %v1184
    %v1453 = vpack.c.b16 %v1193, %v1189
    %v1454 = vpack.c.b16 %v1194, %v1190
    %v1455 = vpack.c.b16 %v1195, %v1191
    %v1456 = vpack.c.b16 %v1196, %v1192
    %v1457 = vpack.c.b16 %v1201, %v1197
    %v1458 = vpack.c.b16 %v1202, %v1198
    %v1459 = vpack.c.b16 %v1203, %v1199
    %v1460 = vpack.c.b16 %v1204, %v1200
    %1717 = vmatprep.subr.bf16.mxu0 %v1234
    %1718 = vmatpush1.bf16.msra.mxu0 %v1233
    %1719 = vmatprep.subr.bf16.mxu0 %v1230
    %1720 = vmatpush1.bf16.msra.mxu0 %v1229
    %1721 = vmatprep.subr.bf16.mxu0 %v1226
    %1722 = vmatpush1.bf16.msra.mxu0 %v1225
    %1723 = vmatprep.subr.bf16.mxu0 %v1222
    %1724 = vmatpush1.bf16.msra.mxu0 %v1221
    %1725 = vmatprep.subr.bf16.mxu0 %v1218
    %1726 = vmatpush1.bf16.msra.mxu0 %v1217
    %1727 = vmatprep.subr.bf16.mxu0 %v1214
    %1728 = vmatpush1.bf16.msra.mxu0 %v1213
    %1729 = vmatprep.subr.bf16.mxu0 %v1210
    %1730 = vmatpush1.bf16.msra.mxu0 %v1209
    %1731 = vmatprep.subr.bf16.mxu0 %v1206
    %1732 = vmatpush1.bf16.msra.mxu0 %v1205
    %1733 = vmatprep.subr.bf16.mxu0 %v1266
    %1734 = vmatpush2.bf16.msra.mxu0 %v1265
    %1735 = vmatprep.subr.bf16.mxu0 %v1262
    %1736 = vmatpush2.bf16.msra.mxu0 %v1261
    %1737 = vmatprep.subr.bf16.mxu0 %v1258
    %1738 = vmatpush2.bf16.msra.mxu0 %v1257
    %1739 = vmatprep.subr.bf16.mxu0 %v1254
    %1740 = vmatpush2.bf16.msra.mxu0 %v1253
    %1741 = vmatprep.subr.bf16.mxu0 %v1250
    %1742 = vmatpush2.bf16.msra.mxu0 %v1249
    %1743 = vmatprep.subr.bf16.mxu0 %v1246
    %1744 = vmatpush2.bf16.msra.mxu0 %v1245
    %1745 = vmatprep.subr.bf16.mxu0 %v1242
    %1746 = vmatpush2.bf16.msra.mxu0 %v1241
    %1747 = vmatprep.subr.bf16.mxu0 %v1238
    %1748 = vmatpush2.bf16.msra.mxu0 %v1237
    %1749 = vmatprep.mubr.bf16.mxu0 %v152
    %1750 = vmatmul.mubr.bf16.gmra.mxu0 %v151
    %v1751 = vpop.f32.mrf.mxu0
    %v1752 = vadd.f32 %v420, %v1751
    %v1753 = vpop.f32.mrf.mxu0
    %v1754 = vadd.f32 %v424, %v1753
    %v1755 = vpop.f32.mrf.mxu0
    %v1756 = vpop.f32.mrf.mxu0
    %1757 = vdwg.mxu0
    %1758 = vmatprep.subr.bf16.mxu0 %v1298
    %1759 = vmatpush1.bf16.msra.mxu0 %v1297
    %1760 = vmatprep.subr.bf16.mxu0 %v1294
    %1761 = vmatpush1.bf16.msra.mxu0 %v1293
    %1762 = vmatprep.subr.bf16.mxu0 %v1290
    %1763 = vmatpush1.bf16.msra.mxu0 %v1289
    %1764 = vmatprep.subr.bf16.mxu0 %v1286
    %1765 = vmatpush1.bf16.msra.mxu0 %v1285
    %1766 = vmatprep.subr.bf16.mxu0 %v1282
    %1767 = vmatpush1.bf16.msra.mxu0 %v1281
    %1768 = vmatprep.subr.bf16.mxu0 %v1278
    %1769 = vmatpush1.bf16.msra.mxu0 %v1277
    %1770 = vmatprep.subr.bf16.mxu0 %v1274
    %1771 = vmatpush1.bf16.msra.mxu0 %v1273
    %1772 = vmatprep.subr.bf16.mxu0 %v1270
    %1773 = vmatpush1.bf16.msra.mxu0 %v1269
    %1774 = vmatprep.subr.bf16.mxu0 %v1330
    %1775 = vmatpush2.bf16.msra.mxu0 %v1329
    %1776 = vmatprep.subr.bf16.mxu0 %v1326
    %1777 = vmatpush2.bf16.msra.mxu0 %v1325
    %1778 = vmatprep.subr.bf16.mxu0 %v1322
    %1779 = vmatpush2.bf16.msra.mxu0 %v1321
    %1780 = vmatprep.subr.bf16.mxu0 %v1318
    %1781 = vmatpush2.bf16.msra.mxu0 %v1317
    %1782 = vmatprep.subr.bf16.mxu0 %v1314
    %1783 = vmatpush2.bf16.msra.mxu0 %v1313
    %1784 = vmatprep.subr.bf16.mxu0 %v1310
    %1785 = vmatpush2.bf16.msra.mxu0 %v1309
    %1786 = vmatprep.subr.bf16.mxu0 %v1306
    %1787 = vmatpush2.bf16.msra.mxu0 %v1305
    %1788 = vmatprep.subr.bf16.mxu0 %v1302
    %1789 = vmatpush2.bf16.msra.mxu0 %v1301
    %1790 = vmatprep.mubr.bf16.mxu0 %v154
    %1791 = vmatmul.mubr.bf16.gmra.mxu0 %v153
    %v1792 = vpop.f32.mrf.mxu0
    %v1793 = vadd.f32 %v1752, %v1792
    %v1794 = vpop.f32.mrf.mxu0
    %v1795 = vadd.f32 %v1754, %v1794
    %v1796 = vpop.f32.mrf.mxu0
    %v1797 = vpop.f32.mrf.mxu0
    %1798 = vdwg.mxu0
    %1799 = vmatprep.subr.bf16.mxu0 %v1362
    %1800 = vmatpush1.bf16.msra.mxu0 %v1361
    %1801 = vmatprep.subr.bf16.mxu0 %v1358
    %1802 = vmatpush1.bf16.msra.mxu0 %v1357
    %1803 = vmatprep.subr.bf16.mxu0 %v1354
    %1804 = vmatpush1.bf16.msra.mxu0 %v1353
    %1805 = vmatprep.subr.bf16.mxu0 %v1350
    %1806 = vmatpush1.bf16.msra.mxu0 %v1349
    %1807 = vmatprep.subr.bf16.mxu0 %v1346
    %1808 = vmatpush1.bf16.msra.mxu0 %v1345
    %1809 = vmatprep.subr.bf16.mxu0 %v1342
    %1810 = vmatpush1.bf16.msra.mxu0 %v1341
    %1811 = vmatprep.subr.bf16.mxu0 %v1338
    %1812 = vmatpush1.bf16.msra.mxu0 %v1337
    %1813 = vmatprep.subr.bf16.mxu0 %v1334
    %1814 = vmatpush1.bf16.msra.mxu0 %v1333
    %1815 = vmatprep.subr.bf16.mxu0 %v1394
    %1816 = vmatpush2.bf16.msra.mxu0 %v1393
    %1817 = vmatprep.subr.bf16.mxu0 %v1390
    %1818 = vmatpush2.bf16.msra.mxu0 %v1389
    %1819 = vmatprep.subr.bf16.mxu0 %v1386
    %1820 = vmatpush2.bf16.msra.mxu0 %v1385
    %1821 = vmatprep.subr.bf16.mxu0 %v1382
    %1822 = vmatpush2.bf16.msra.mxu0 %v1381
    %1823 = vmatprep.subr.bf16.mxu0 %v1378
    %1824 = vmatpush2.bf16.msra.mxu0 %v1377
    %1825 = vmatprep.subr.bf16.mxu0 %v1374
    %1826 = vmatpush2.bf16.msra.mxu0 %v1373
    %1827 = vmatprep.subr.bf16.mxu0 %v1370
    %1828 = vmatpush2.bf16.msra.mxu0 %v1369
    %1829 = vmatprep.subr.bf16.mxu0 %v1366
    %1830 = vmatpush2.bf16.msra.mxu0 %v1365
    %1831 = vmatprep.mubr.bf16.mxu0 %v156
    %1832 = vmatmul.mubr.bf16.gmra.mxu0 %v155
    %v1833 = vpop.f32.mrf.mxu0
    %v1834 = vadd.f32 %v1793, %v1833
    %v1835 = vpop.f32.mrf.mxu0
    %v1836 = vadd.f32 %v1795, %v1835
    %v1837 = vpop.f32.mrf.mxu0
    %v1838 = vpop.f32.mrf.mxu0
    %1839 = vdwg.mxu0
    %1840 = vmatprep.subr.bf16.mxu0 %v1426
    %1841 = vmatpush1.bf16.msra.mxu0 %v1425
    %1842 = vmatprep.subr.bf16.mxu0 %v1422
    %1843 = vmatpush1.bf16.msra.mxu0 %v1421
    %1844 = vmatprep.subr.bf16.mxu0 %v1418
    %1845 = vmatpush1.bf16.msra.mxu0 %v1417
    %1846 = vmatprep.subr.bf16.mxu0 %v1414
    %1847 = vmatpush1.bf16.msra.mxu0 %v1413
    %1848 = vmatprep.subr.bf16.mxu0 %v1410
    %1849 = vmatpush1.bf16.msra.mxu0 %v1409
    %1850 = vmatprep.subr.bf16.mxu0 %v1406
    %1851 = vmatpush1.bf16.msra.mxu0 %v1405
    %1852 = vmatprep.subr.bf16.mxu0 %v1402
    %1853 = vmatpush1.bf16.msra.mxu0 %v1401
    %1854 = vmatprep.subr.bf16.mxu0 %v1398
    %1855 = vmatpush1.bf16.msra.mxu0 %v1397
    %1856 = vmatprep.subr.bf16.mxu0 %v1458
    %1857 = vmatpush2.bf16.msra.mxu0 %v1457
    %1858 = vmatprep.subr.bf16.mxu0 %v1454
    %1859 = vmatpush2.bf16.msra.mxu0 %v1453
    %1860 = vmatprep.subr.bf16.mxu0 %v1450
    %1861 = vmatpush2.bf16.msra.mxu0 %v1449
    %1862 = vmatprep.subr.bf16.mxu0 %v1446
    %1863 = vmatpush2.bf16.msra.mxu0 %v1445
    %1864 = vmatprep.subr.bf16.mxu0 %v1442
    %1865 = vmatpush2.bf16.msra.mxu0 %v1441
    %1866 = vmatprep.subr.bf16.mxu0 %v1438
    %1867 = vmatpush2.bf16.msra.mxu0 %v1437
    %1868 = vmatprep.subr.bf16.mxu0 %v1434
    %1869 = vmatpush2.bf16.msra.mxu0 %v1433
    %1870 = vmatprep.subr.bf16.mxu0 %v1430
    %1871 = vmatpush2.bf16.msra.mxu0 %v1429
    %1872 = vmatprep.mubr.bf16.mxu0 %v158
    %1873 = vmatmul.mubr.bf16.gmra.mxu0 %v157
    %v1874 = vpop.f32.mrf.mxu0
    %v1875 = vadd.f32 %v1834, %v1874
    %v1876 = vpop.f32.mrf.mxu0
    %v1877 = vadd.f32 %v1836, %v1876
    %v1878 = vpop.f32.mrf.mxu0
    %v1879 = vpop.f32.mrf.mxu0
    %1880 = vdwg.mxu0
    %1881 = vmatprep.subr.bf16.mxu0 %v1236
    %1882 = vmatpush1.bf16.msra.mxu0 %v1235
    %1883 = vmatprep.subr.bf16.mxu0 %v1232
    %1884 = vmatpush1.bf16.msra.mxu0 %v1231
    %1885 = vmatprep.subr.bf16.mxu0 %v1228
    %1886 = vmatpush1.bf16.msra.mxu0 %v1227
    %1887 = vmatprep.subr.bf16.mxu0 %v1224
    %1888 = vmatpush1.bf16.msra.mxu0 %v1223
    %1889 = vmatprep.subr.bf16.mxu0 %v1220
    %1890 = vmatpush1.bf16.msra.mxu0 %v1219
    %1891 = vmatprep.subr.bf16.mxu0 %v1216
    %1892 = vmatpush1.bf16.msra.mxu0 %v1215
    %1893 = vmatprep.subr.bf16.mxu0 %v1212
    %1894 = vmatpush1.bf16.msra.mxu0 %v1211
    %1895 = vmatprep.subr.bf16.mxu0 %v1208
    %1896 = vmatpush1.bf16.msra.mxu0 %v1207
    %1897 = vmatprep.subr.bf16.mxu0 %v1268
    %1898 = vmatpush2.bf16.msra.mxu0 %v1267
    %1899 = vmatprep.subr.bf16.mxu0 %v1264
    %1900 = vmatpush2.bf16.msra.mxu0 %v1263
    %1901 = vmatprep.subr.bf16.mxu0 %v1260
    %1902 = vmatpush2.bf16.msra.mxu0 %v1259
    %1903 = vmatprep.subr.bf16.mxu0 %v1256
    %1904 = vmatpush2.bf16.msra.mxu0 %v1255
    %1905 = vmatprep.subr.bf16.mxu0 %v1252
    %1906 = vmatpush2.bf16.msra.mxu0 %v1251
    %1907 = vmatprep.subr.bf16.mxu0 %v1248
    %1908 = vmatpush2.bf16.msra.mxu0 %v1247
    %1909 = vmatprep.subr.bf16.mxu0 %v1244
    %1910 = vmatpush2.bf16.msra.mxu0 %v1243
    %1911 = vmatprep.subr.bf16.mxu0 %v1240
    %1912 = vmatpush2.bf16.msra.mxu0 %v1239
    %1913 = vmatprep.mubr.bf16.mxu0 %v152
    %1914 = vmatmul.mubr.bf16.gmra.mxu0 %v151
    %v1915 = vpop.f32.mrf.mxu0
    %v1916 = vadd.f32 %v428, %v1915
    %v1917 = vpop.f32.mrf.mxu0
    %v1918 = vadd.f32 %v432, %v1917
    %v1919 = vpop.f32.mrf.mxu0
    %v1920 = vpop.f32.mrf.mxu0
    %1921 = vdwg.mxu0
    %1922 = vmatprep.subr.bf16.mxu0 %v1300
    %1923 = vmatpush1.bf16.msra.mxu0 %v1299
    %1924 = vmatprep.subr.bf16.mxu0 %v1296
    %1925 = vmatpush1.bf16.msra.mxu0 %v1295
    %1926 = vmatprep.subr.bf16.mxu0 %v1292
    %1927 = vmatpush1.bf16.msra.mxu0 %v1291
    %1928 = vmatprep.subr.bf16.mxu0 %v1288
    %1929 = vmatpush1.bf16.msra.mxu0 %v1287
    %1930 = vmatprep.subr.bf16.mxu0 %v1284
    %1931 = vmatpush1.bf16.msra.mxu0 %v1283
    %1932 = vmatprep.subr.bf16.mxu0 %v1280
    %1933 = vmatpush1.bf16.msra.mxu0 %v1279
    %1934 = vmatprep.subr.bf16.mxu0 %v1276
    %1935 = vmatpush1.bf16.msra.mxu0 %v1275
    %1936 = vmatprep.subr.bf16.mxu0 %v1272
    %1937 = vmatpush1.bf16.msra.mxu0 %v1271
    %1938 = vmatprep.subr.bf16.mxu0 %v1332
    %1939 = vmatpush2.bf16.msra.mxu0 %v1331
    %1940 = vmatprep.subr.bf16.mxu0 %v1328
    %1941 = vmatpush2.bf16.msra.mxu0 %v1327
    %1942 = vmatprep.subr.bf16.mxu0 %v1324
    %1943 = vmatpush2.bf16.msra.mxu0 %v1323
    %1944 = vmatprep.subr.bf16.mxu0 %v1320
    %1945 = vmatpush2.bf16.msra.mxu0 %v1319
    %1946 = vmatprep.subr.bf16.mxu0 %v1316
    %1947 = vmatpush2.bf16.msra.mxu0 %v1315
    %1948 = vmatprep.subr.bf16.mxu0 %v1312
    %1949 = vmatpush2.bf16.msra.mxu0 %v1311
    %1950 = vmatprep.subr.bf16.mxu0 %v1308
    %1951 = vmatpush2.bf16.msra.mxu0 %v1307
    %1952 = vmatprep.subr.bf16.mxu0 %v1304
    %1953 = vmatpush2.bf16.msra.mxu0 %v1303
    %1954 = vmatprep.mubr.bf16.mxu0 %v154
    %1955 = vmatmul.mubr.bf16.gmra.mxu0 %v153
    %v1956 = vpop.f32.mrf.mxu0
    %v1957 = vadd.f32 %v1916, %v1956
    %v1958 = vpop.f32.mrf.mxu0
    %v1959 = vadd.f32 %v1918, %v1958
    %v1960 = vpop.f32.mrf.mxu0
    %v1961 = vpop.f32.mrf.mxu0
    %1962 = vdwg.mxu0
    %1963 = vmatprep.subr.bf16.mxu0 %v1364
    %1964 = vmatpush1.bf16.msra.mxu0 %v1363
    %1965 = vmatprep.subr.bf16.mxu0 %v1360
    %1966 = vmatpush1.bf16.msra.mxu0 %v1359
    %1967 = vmatprep.subr.bf16.mxu0 %v1356
    %1968 = vmatpush1.bf16.msra.mxu0 %v1355
    %1969 = vmatprep.subr.bf16.mxu0 %v1352
    %1970 = vmatpush1.bf16.msra.mxu0 %v1351
    %1971 = vmatprep.subr.bf16.mxu0 %v1348
    %1972 = vmatpush1.bf16.msra.mxu0 %v1347
    %1973 = vmatprep.subr.bf16.mxu0 %v1344
    %1974 = vmatpush1.bf16.msra.mxu0 %v1343
    %1975 = vmatprep.subr.bf16.mxu0 %v1340
    %1976 = vmatpush1.bf16.msra.mxu0 %v1339
    %1977 = vmatprep.subr.bf16.mxu0 %v1336
    %1978 = vmatpush1.bf16.msra.mxu0 %v1335
    %1979 = vmatprep.subr.bf16.mxu0 %v1396
    %1980 = vmatpush2.bf16.msra.mxu0 %v1395
    %1981 = vmatprep.subr.bf16.mxu0 %v1392
    %1982 = vmatpush2.bf16.msra.mxu0 %v1391
    %1983 = vmatprep.subr.bf16.mxu0 %v1388
    %1984 = vmatpush2.bf16.msra.mxu0 %v1387
    %1985 = vmatprep.subr.bf16.mxu0 %v1384
    %1986 = vmatpush2.bf16.msra.mxu0 %v1383
    %1987 = vmatprep.subr.bf16.mxu0 %v1380
    %1988 = vmatpush2.bf16.msra.mxu0 %v1379
    %1989 = vmatprep.subr.bf16.mxu0 %v1376
    %1990 = vmatpush2.bf16.msra.mxu0 %v1375
    %1991 = vmatprep.subr.bf16.mxu0 %v1372
    %1992 = vmatpush2.bf16.msra.mxu0 %v1371
    %1993 = vmatprep.subr.bf16.mxu0 %v1368
    %1994 = vmatpush2.bf16.msra.mxu0 %v1367
    %1995 = vmatprep.mubr.bf16.mxu0 %v156
    %1996 = vmatmul.mubr.bf16.gmra.mxu0 %v155
    %v1997 = vpop.f32.mrf.mxu0
    %v1998 = vadd.f32 %v1957, %v1997
    %v1999 = vpop.f32.mrf.mxu0
    %v2000 = vadd.f32 %v1959, %v1999
    %v2001 = vpop.f32.mrf.mxu0
    %v2002 = vpop.f32.mrf.mxu0
    %2003 = vdwg.mxu0
    %2004 = vmatprep.subr.bf16.mxu0 %v1428
    %2005 = vmatpush1.bf16.msra.mxu0 %v1427
    %2006 = vmatprep.subr.bf16.mxu0 %v1424
    %2007 = vmatpush1.bf16.msra.mxu0 %v1423
    %2008 = vmatprep.subr.bf16.mxu0 %v1420
    %2009 = vmatpush1.bf16.msra.mxu0 %v1419
    %2010 = vmatprep.subr.bf16.mxu0 %v1416
    %2011 = vmatpush1.bf16.msra.mxu0 %v1415
    %2012 = vmatprep.subr.bf16.mxu0 %v1412
    %2013 = vmatpush1.bf16.msra.mxu0 %v1411
    %2014 = vmatprep.subr.bf16.mxu0 %v1408
    %2015 = vmatpush1.bf16.msra.mxu0 %v1407
    %2016 = vmatprep.subr.bf16.mxu0 %v1404
    %2017 = vmatpush1.bf16.msra.mxu0 %v1403
    %2018 = vmatprep.subr.bf16.mxu0 %v1400
    %2019 = vmatpush1.bf16.msra.mxu0 %v1399
    %2020 = vmatprep.subr.bf16.mxu0 %v1460
    %2021 = vmatpush2.bf16.msra.mxu0 %v1459
    %2022 = vmatprep.subr.bf16.mxu0 %v1456
    %2023 = vmatpush2.bf16.msra.mxu0 %v1455
    %2024 = vmatprep.subr.bf16.mxu0 %v1452
    %2025 = vmatpush2.bf16.msra.mxu0 %v1451
    %2026 = vmatprep.subr.bf16.mxu0 %v1448
    %2027 = vmatpush2.bf16.msra.mxu0 %v1447
    %2028 = vmatprep.subr.bf16.mxu0 %v1444
    %2029 = vmatpush2.bf16.msra.mxu0 %v1443
    %2030 = vmatprep.subr.bf16.mxu0 %v1440
    %2031 = vmatpush2.bf16.msra.mxu0 %v1439
    %2032 = vmatprep.subr.bf16.mxu0 %v1436
    %2033 = vmatpush2.bf16.msra.mxu0 %v1435
    %2034 = vmatprep.subr.bf16.mxu0 %v1432
    %2035 = vmatpush2.bf16.msra.mxu0 %v1431
    %2036 = vmatprep.mubr.bf16.mxu0 %v158
    %2037 = vmatmul.mubr.bf16.gmra.mxu0 %v157
    %v2038 = vpop.f32.mrf.mxu0
    %v2039 = vadd.f32 %v1998, %v2038
    %v2040 = vpop.f32.mrf.mxu0
    %v2041 = vadd.f32 %v2000, %v2040
    %v2042 = vpop.f32.mrf.mxu0
    %v2043 = vpop.f32.mrf.mxu0
    %2044 = vdwg.mxu0
    %v2045 = vmax.f32 %v1875, 0.0
    %v2046 = vmax.f32 %v1877, 0.0
    %v2047 = vmax.f32 %v2039, 0.0
    %v2048 = vmax.f32 %v2041, 0.0
    %v2049 = vpack.c.bf16 %v2045, %v2045
    %v2050 = vpack.c.bf16 %v2046, %v2046
    %v2051 = vpack.c.bf16 %v2047, %v2047
    %v2052 = vpack.c.bf16 %v2048, %v2048
    %v2053 = vld [vmem:[#allocation8] sm:$0xff]
    %v2054 = vld [vmem:[#allocation8 + $0x8] sm:$0xff]
    %v2055 = vld [vmem:[#allocation8 + $0x10] sm:$0xff]
    %v2056 = vld [vmem:[#allocation8 + $0x18] sm:$0xff]
    %v2057 = vld [vmem:[#allocation8 + $0x20] sm:$0xff]
    %v2058 = vld [vmem:[#allocation8 + $0x28] sm:$0xff]
    %v2059 = vld [vmem:[#allocation8 + $0x30] sm:$0xff]
    %v2060 = vld [vmem:[#allocation8 + $0x38] sm:$0xff]
    %v2061 = vld [vmem:[#allocation8 + $0x40] sm:$0xff]
    %v2062 = vld [vmem:[#allocation8 + $0x48] sm:$0xff]
    %v2063 = vld [vmem:[#allocation8 + $0x50] sm:$0xff]
    %v2064 = vld [vmem:[#allocation8 + $0x58] sm:$0xff]
    %v2065 = vld [vmem:[#allocation8 + $0x60] sm:$0xff]
    %v2066 = vld [vmem:[#allocation8 + $0x68] sm:$0xff]
    %v2067 = vld [vmem:[#allocation8 + $0x70] sm:$0xff]
    %v2068 = vld [vmem:[#allocation8 + $0x78] sm:$0xff]
    %v2069 = vld [vmem:[#allocation8 + $0x80] sm:$0xff]
    %v2070 = vld [vmem:[#allocation8 + $0x88] sm:$0xff]
    %v2071 = vld [vmem:[#allocation8 + $0x90] sm:$0xff]
    %v2072 = vld [vmem:[#allocation8 + $0x98] sm:$0xff]
    %v2073 = vld [vmem:[#allocation8 + $0xa0] sm:$0xff]
    %v2074 = vld [vmem:[#allocation8 + $0xa8] sm:$0xff]
    %v2075 = vld [vmem:[#allocation8 + $0xb0] sm:$0xff]
    %v2076 = vld [vmem:[#allocation8 + $0xb8] sm:$0xff]
    %v2077 = vld [vmem:[#allocation8 + $0xc0] sm:$0xff]
    %v2078 = vld [vmem:[#allocation8 + $0xc8] sm:$0xff]
    %v2079 = vld [vmem:[#allocation8 + $0xd0] sm:$0xff]
    %v2080 = vld [vmem:[#allocation8 + $0xd8] sm:$0xff]
    %v2081 = vld [vmem:[#allocation8 + $0xe0] sm:$0xff]
    %v2082 = vld [vmem:[#allocation8 + $0xe8] sm:$0xff]
    %v2083 = vld [vmem:[#allocation8 + $0xf0] sm:$0xff]
    %v2084 = vld [vmem:[#allocation8 + $0xf8] sm:$0xff]
    %v2085 = vld [vmem:[#allocation8 + $0x100] sm:$0xff]
    %v2086 = vld [vmem:[#allocation8 + $0x108] sm:$0xff]
    %v2087 = vld [vmem:[#allocation8 + $0x110] sm:$0xff]
    %v2088 = vld [vmem:[#allocation8 + $0x118] sm:$0xff]
    %v2089 = vld [vmem:[#allocation8 + $0x120] sm:$0xff]
    %v2090 = vld [vmem:[#allocation8 + $0x128] sm:$0xff]
    %v2091 = vld [vmem:[#allocation8 + $0x130] sm:$0xff]
    %v2092 = vld [vmem:[#allocation8 + $0x138] sm:$0xff]
    %v2093 = vld [vmem:[#allocation8 + $0x140] sm:$0xff]
    %v2094 = vld [vmem:[#allocation8 + $0x148] sm:$0xff]
    %v2095 = vld [vmem:[#allocation8 + $0x150] sm:$0xff]
    %v2096 = vld [vmem:[#allocation8 + $0x158] sm:$0xff]
    %v2097 = vld [vmem:[#allocation8 + $0x160] sm:$0xff]
    %v2098 = vld [vmem:[#allocation8 + $0x168] sm:$0xff]
    %v2099 = vld [vmem:[#allocation8 + $0x170] sm:$0xff]
    %v2100 = vld [vmem:[#allocation8 + $0x178] sm:$0xff]
    %v2101 = vld [vmem:[#allocation8 + $0x180] sm:$0xff]
    %v2102 = vld [vmem:[#allocation8 + $0x188] sm:$0xff]
    %v2103 = vld [vmem:[#allocation8 + $0x190] sm:$0xff]
    %v2104 = vld [vmem:[#allocation8 + $0x198] sm:$0xff]
    %v2105 = vld [vmem:[#allocation8 + $0x1a0] sm:$0xff]
    %v2106 = vld [vmem:[#allocation8 + $0x1a8] sm:$0xff]
    %v2107 = vld [vmem:[#allocation8 + $0x1b0] sm:$0xff]
    %v2108 = vld [vmem:[#allocation8 + $0x1b8] sm:$0xff]
    %v2109 = vld [vmem:[#allocation8 + $0x1c0] sm:$0xff]
    %v2110 = vld [vmem:[#allocation8 + $0x1c8] sm:$0xff]
    %v2111 = vld [vmem:[#allocation8 + $0x1d0] sm:$0xff]
    %v2112 = vld [vmem:[#allocation8 + $0x1d8] sm:$0xff]
    %v2113 = vld [vmem:[#allocation8 + $0x1e0] sm:$0xff]
    %v2114 = vld [vmem:[#allocation8 + $0x1e8] sm:$0xff]
    %v2115 = vld [vmem:[#allocation8 + $0x1f0] sm:$0xff]
    %v2116 = vld [vmem:[#allocation8 + $0x1f8] sm:$0xff]
    %v2117 = vld [vmem:[%s4] sm:$0x3]
    %v2119 = vlaneseq
    %v2120 = vshrl.u32 %v2119, 7
    %v2121 = vsub.s32 0, %v2120
    %v2122 = vrot.slane %v2117, %v2121
    %v2123 = vlaneseq
    %v2124 = vshrl.u32 %v2123, 7
    %v2125 = vsub.s32 1, %v2124
    %v2126 = vrot.slane %v2117, %v2125
    %v2193 = vunpack.c.l.b16 %v2053
    %v2194 = vunpack.c.h.b16 %v2053
    %v2195 = vunpack.c.l.b16 %v2054
    %v2196 = vunpack.c.h.b16 %v2054
    %v2197 = vunpack.c.l.b16 %v2055
    %v2198 = vunpack.c.h.b16 %v2055
    %v2199 = vunpack.c.l.b16 %v2056
    %v2200 = vunpack.c.h.b16 %v2056
    %v2201 = vunpack.c.l.b16 %v2057
    %v2202 = vunpack.c.h.b16 %v2057
    %v2203 = vunpack.c.l.b16 %v2058
    %v2204 = vunpack.c.h.b16 %v2058
    %v2205 = vunpack.c.l.b16 %v2059
    %v2206 = vunpack.c.h.b16 %v2059
    %v2207 = vunpack.c.l.b16 %v2060
    %v2208 = vunpack.c.h.b16 %v2060
    %v2209 = vunpack.c.l.b16 %v2061
    %v2210 = vunpack.c.h.b16 %v2061
    %v2211 = vunpack.c.l.b16 %v2062
    %v2212 = vunpack.c.h.b16 %v2062
    %v2213 = vunpack.c.l.b16 %v2063
    %v2214 = vunpack.c.h.b16 %v2063
    %v2215 = vunpack.c.l.b16 %v2064
    %v2216 = vunpack.c.h.b16 %v2064
    %v2217 = vunpack.c.l.b16 %v2065
    %v2218 = vunpack.c.h.b16 %v2065
    %v2219 = vunpack.c.l.b16 %v2066
    %v2220 = vunpack.c.h.b16 %v2066
    %v2221 = vunpack.c.l.b16 %v2067
    %v2222 = vunpack.c.h.b16 %v2067
    %v2223 = vunpack.c.l.b16 %v2068
    %v2224 = vunpack.c.h.b16 %v2068
    %v2225 = vunpack.c.l.b16 %v2069
    %v2226 = vunpack.c.h.b16 %v2069
    %v2227 = vunpack.c.l.b16 %v2070
    %v2228 = vunpack.c.h.b16 %v2070
    %v2229 = vunpack.c.l.b16 %v2071
    %v2230 = vunpack.c.h.b16 %v2071
    %v2231 = vunpack.c.l.b16 %v2072
    %v2232 = vunpack.c.h.b16 %v2072
    %v2233 = vunpack.c.l.b16 %v2073
    %v2234 = vunpack.c.h.b16 %v2073
    %v2235 = vunpack.c.l.b16 %v2074
    %v2236 = vunpack.c.h.b16 %v2074
    %v2237 = vunpack.c.l.b16 %v2075
    %v2238 = vunpack.c.h.b16 %v2075
    %v2239 = vunpack.c.l.b16 %v2076
    %v2240 = vunpack.c.h.b16 %v2076
    %v2241 = vunpack.c.l.b16 %v2077
    %v2242 = vunpack.c.h.b16 %v2077
    %v2243 = vunpack.c.l.b16 %v2078
    %v2244 = vunpack.c.h.b16 %v2078
    %v2245 = vunpack.c.l.b16 %v2079
    %v2246 = vunpack.c.h.b16 %v2079
    %v2247 = vunpack.c.l.b16 %v2080
    %v2248 = vunpack.c.h.b16 %v2080
    %v2249 = vunpack.c.l.b16 %v2081
    %v2250 = vunpack.c.h.b16 %v2081
    %v2251 = vunpack.c.l.b16 %v2082
    %v2252 = vunpack.c.h.b16 %v2082
    %v2253 = vunpack.c.l.b16 %v2083
    %v2254 = vunpack.c.h.b16 %v2083
    %v2255 = vunpack.c.l.b16 %v2084
    %v2256 = vunpack.c.h.b16 %v2084
    %v2257 = vunpack.c.l.b16 %v2085
    %v2258 = vunpack.c.h.b16 %v2085
    %v2259 = vunpack.c.l.b16 %v2086
    %v2260 = vunpack.c.h.b16 %v2086
    %v2261 = vunpack.c.l.b16 %v2087
    %v2262 = vunpack.c.h.b16 %v2087
    %v2263 = vunpack.c.l.b16 %v2088
    %v2264 = vunpack.c.h.b16 %v2088
    %v2265 = vunpack.c.l.b16 %v2089
    %v2266 = vunpack.c.h.b16 %v2089
    %v2267 = vunpack.c.l.b16 %v2090
    %v2268 = vunpack.c.h.b16 %v2090
    %v2269 = vunpack.c.l.b16 %v2091
    %v2270 = vunpack.c.h.b16 %v2091
    %v2271 = vunpack.c.l.b16 %v2092
    %v2272 = vunpack.c.h.b16 %v2092
    %v2273 = vunpack.c.l.b16 %v2093
    %v2274 = vunpack.c.h.b16 %v2093
    %v2275 = vunpack.c.l.b16 %v2094
    %v2276 = vunpack.c.h.b16 %v2094
    %v2277 = vunpack.c.l.b16 %v2095
    %v2278 = vunpack.c.h.b16 %v2095
    %v2279 = vunpack.c.l.b16 %v2096
    %v2280 = vunpack.c.h.b16 %v2096
    %v2281 = vunpack.c.l.b16 %v2097
    %v2282 = vunpack.c.h.b16 %v2097
    %v2283 = vunpack.c.l.b16 %v2098
    %v2284 = vunpack.c.h.b16 %v2098
    %v2285 = vunpack.c.l.b16 %v2099
    %v2286 = vunpack.c.h.b16 %v2099
    %v2287 = vunpack.c.l.b16 %v2100
    %v2288 = vunpack.c.h.b16 %v2100
    %v2289 = vunpack.c.l.b16 %v2101
    %v2290 = vunpack.c.h.b16 %v2101
    %v2291 = vunpack.c.l.b16 %v2102
    %v2292 = vunpack.c.h.b16 %v2102
    %v2293 = vunpack.c.l.b16 %v2103
    %v2294 = vunpack.c.h.b16 %v2103
    %v2295 = vunpack.c.l.b16 %v2104
    %v2296 = vunpack.c.h.b16 %v2104
    %v2297 = vunpack.c.l.b16 %v2105
    %v2298 = vunpack.c.h.b16 %v2105
    %v2299 = vunpack.c.l.b16 %v2106
    %v2300 = vunpack.c.h.b16 %v2106
    %v2301 = vunpack.c.l.b16 %v2107
    %v2302 = vunpack.c.h.b16 %v2107
    %v2303 = vunpack.c.l.b16 %v2108
    %v2304 = vunpack.c.h.b16 %v2108
    %v2305 = vunpack.c.l.b16 %v2109
    %v2306 = vunpack.c.h.b16 %v2109
    %v2307 = vunpack.c.l.b16 %v2110
    %v2308 = vunpack.c.h.b16 %v2110
    %v2309 = vunpack.c.l.b16 %v2111
    %v2310 = vunpack.c.h.b16 %v2111
    %v2311 = vunpack.c.l.b16 %v2112
    %v2312 = vunpack.c.h.b16 %v2112
    %v2313 = vunpack.c.l.b16 %v2113
    %v2314 = vunpack.c.h.b16 %v2113
    %v2315 = vunpack.c.l.b16 %v2114
    %v2316 = vunpack.c.h.b16 %v2114
    %v2317 = vunpack.c.l.b16 %v2115
    %v2318 = vunpack.c.h.b16 %v2115
    %v2319 = vunpack.c.l.b16 %v2116
    %v2320 = vunpack.c.h.b16 %v2116
    %v2321 = vpack.c.b16 %v2195, %v2193
    %v2322 = vpack.c.b16 %v2196, %v2194
    %v2323 = vpack.c.b16 %v2199, %v2197
    %v2324 = vpack.c.b16 %v2200, %v2198
    %v2325 = vpack.c.b16 %v2203, %v2201
    %v2326 = vpack.c.b16 %v2204, %v2202
    %v2327 = vpack.c.b16 %v2207, %v2205
    %v2328 = vpack.c.b16 %v2208, %v2206
    %v2329 = vpack.c.b16 %v2211, %v2209
    %v2330 = vpack.c.b16 %v2212, %v2210
    %v2331 = vpack.c.b16 %v2215, %v2213
    %v2332 = vpack.c.b16 %v2216, %v2214
    %v2333 = vpack.c.b16 %v2219, %v2217
    %v2334 = vpack.c.b16 %v2220, %v2218
    %v2335 = vpack.c.b16 %v2223, %v2221
    %v2336 = vpack.c.b16 %v2224, %v2222
    %v2337 = vpack.c.b16 %v2227, %v2225
    %v2338 = vpack.c.b16 %v2228, %v2226
    %v2339 = vpack.c.b16 %v2231, %v2229
    %v2340 = vpack.c.b16 %v2232, %v2230
    %v2341 = vpack.c.b16 %v2235, %v2233
    %v2342 = vpack.c.b16 %v2236, %v2234
    %v2343 = vpack.c.b16 %v2239, %v2237
    %v2344 = vpack.c.b16 %v2240, %v2238
    %v2345 = vpack.c.b16 %v2243, %v2241
    %v2346 = vpack.c.b16 %v2244, %v2242
    %v2347 = vpack.c.b16 %v2247, %v2245
    %v2348 = vpack.c.b16 %v2248, %v2246
    %v2349 = vpack.c.b16 %v2251, %v2249
    %v2350 = vpack.c.b16 %v2252, %v2250
    %v2351 = vpack.c.b16 %v2255, %v2253
    %v2352 = vpack.c.b16 %v2256, %v2254
    %v2353 = vpack.c.b16 %v2259, %v2257
    %v2354 = vpack.c.b16 %v2260, %v2258
    %v2355 = vpack.c.b16 %v2263, %v2261
    %v2356 = vpack.c.b16 %v2264, %v2262
    %v2357 = vpack.c.b16 %v2267, %v2265
    %v2358 = vpack.c.b16 %v2268, %v2266
    %v2359 = vpack.c.b16 %v2271, %v2269
    %v2360 = vpack.c.b16 %v2272, %v2270
    %v2361 = vpack.c.b16 %v2275, %v2273
    %v2362 = vpack.c.b16 %v2276, %v2274
    %v2363 = vpack.c.b16 %v2279, %v2277
    %v2364 = vpack.c.b16 %v2280, %v2278
    %v2365 = vpack.c.b16 %v2283, %v2281
    %v2366 = vpack.c.b16 %v2284, %v2282
    %v2367 = vpack.c.b16 %v2287, %v2285
    %v2368 = vpack.c.b16 %v2288, %v2286
    %v2369 = vpack.c.b16 %v2291, %v2289
    %v2370 = vpack.c.b16 %v2292, %v2290
    %v2371 = vpack.c.b16 %v2295, %v2293
    %v2372 = vpack.c.b16 %v2296, %v2294
    %v2373 = vpack.c.b16 %v2299, %v2297
    %v2374 = vpack.c.b16 %v2300, %v2298
    %v2375 = vpack.c.b16 %v2303, %v2301
    %v2376 = vpack.c.b16 %v2304, %v2302
    %v2377 = vpack.c.b16 %v2307, %v2305
    %v2378 = vpack.c.b16 %v2308, %v2306
    %v2379 = vpack.c.b16 %v2311, %v2309
    %v2380 = vpack.c.b16 %v2312, %v2310
    %v2381 = vpack.c.b16 %v2315, %v2313
    %v2382 = vpack.c.b16 %v2316, %v2314
    %v2383 = vpack.c.b16 %v2319, %v2317
    %v2384 = vpack.c.b16 %v2320, %v2318
    %2449 = vmatprep.subr.bf16.mxu0 %v2336
    %2450 = vmatpush1.bf16.msra.mxu0 %v2335
    %2451 = vmatprep.subr.bf16.mxu0 %v2334
    %2452 = vmatpush1.bf16.msra.mxu0 %v2333
    %2453 = vmatprep.subr.bf16.mxu0 %v2332
    %2454 = vmatpush1.bf16.msra.mxu0 %v2331
    %2455 = vmatprep.subr.bf16.mxu0 %v2330
    %2456 = vmatpush1.bf16.msra.mxu0 %v2329
    %2457 = vmatprep.subr.bf16.mxu0 %v2328
    %2458 = vmatpush1.bf16.msra.mxu0 %v2327
    %2459 = vmatprep.subr.bf16.mxu0 %v2326
    %2460 = vmatpush1.bf16.msra.mxu0 %v2325
    %2461 = vmatprep.subr.bf16.mxu0 %v2324
    %2462 = vmatpush1.bf16.msra.mxu0 %v2323
    %2463 = vmatprep.subr.bf16.mxu0 %v2322
    %2464 = vmatpush1.bf16.msra.mxu0 %v2321
    %2465 = vmatprep.subr.bf16.mxu0 %v2352
    %2466 = vmatpush2.bf16.msra.mxu0 %v2351
    %2467 = vmatprep.subr.bf16.mxu0 %v2350
    %2468 = vmatpush2.bf16.msra.mxu0 %v2349
    %2469 = vmatprep.subr.bf16.mxu0 %v2348
    %2470 = vmatpush2.bf16.msra.mxu0 %v2347
    %2471 = vmatprep.subr.bf16.mxu0 %v2346
    %2472 = vmatpush2.bf16.msra.mxu0 %v2345
    %2473 = vmatprep.subr.bf16.mxu0 %v2344
    %2474 = vmatpush2.bf16.msra.mxu0 %v2343
    %2475 = vmatprep.subr.bf16.mxu0 %v2342
    %2476 = vmatpush2.bf16.msra.mxu0 %v2341
    %2477 = vmatprep.subr.bf16.mxu0 %v2340
    %2478 = vmatpush2.bf16.msra.mxu0 %v2339
    %2479 = vmatprep.subr.bf16.mxu0 %v2338
    %2480 = vmatpush2.bf16.msra.mxu0 %v2337
    %2481 = vmatprep.mubr.bf16.mxu0 %v2050
    %2482 = vmatmul.mubr.bf16.gmra.mxu0 %v2049
    %v2483 = vpop.f32.mrf.mxu0
    %v2484 = vadd.f32 %v2122, %v2483
    %v2485 = vpop.f32.mrf.mxu0
    %v2486 = vadd.f32 %v2126, %v2485
    %v2487 = vpop.f32.mrf.mxu0
    %v2488 = vpop.f32.mrf.mxu0
    %2489 = vdwg.mxu0
    %2490 = vmatprep.subr.bf16.mxu0 %v2368
    %2491 = vmatpush1.bf16.msra.mxu0 %v2367
    %2492 = vmatprep.subr.bf16.mxu0 %v2366
    %2493 = vmatpush1.bf16.msra.mxu0 %v2365
    %2494 = vmatprep.subr.bf16.mxu0 %v2364
    %2495 = vmatpush1.bf16.msra.mxu0 %v2363
    %2496 = vmatprep.subr.bf16.mxu0 %v2362
    %2497 = vmatpush1.bf16.msra.mxu0 %v2361
    %2498 = vmatprep.subr.bf16.mxu0 %v2360
    %2499 = vmatpush1.bf16.msra.mxu0 %v2359
    %2500 = vmatprep.subr.bf16.mxu0 %v2358
    %2501 = vmatpush1.bf16.msra.mxu0 %v2357
    %2502 = vmatprep.subr.bf16.mxu0 %v2356
    %2503 = vmatpush1.bf16.msra.mxu0 %v2355
    %2504 = vmatprep.subr.bf16.mxu0 %v2354
    %2505 = vmatpush1.bf16.msra.mxu0 %v2353
    %2506 = vmatprep.subr.bf16.mxu0 %v2384
    %2507 = vmatpush2.bf16.msra.mxu0 %v2383
    %2508 = vmatprep.subr.bf16.mxu0 %v2382
    %2509 = vmatpush2.bf16.msra.mxu0 %v2381
    %2510 = vmatprep.subr.bf16.mxu0 %v2380
    %2511 = vmatpush2.bf16.msra.mxu0 %v2379
    %2512 = vmatprep.subr.bf16.mxu0 %v2378
    %2513 = vmatpush2.bf16.msra.mxu0 %v2377
    %2514 = vmatprep.subr.bf16.mxu0 %v2376
    %2515 = vmatpush2.bf16.msra.mxu0 %v2375
    %2516 = vmatprep.subr.bf16.mxu0 %v2374
    %2517 = vmatpush2.bf16.msra.mxu0 %v2373
    %2518 = vmatprep.subr.bf16.mxu0 %v2372
    %2519 = vmatpush2.bf16.msra.mxu0 %v2371
    %2520 = vmatprep.subr.bf16.mxu0 %v2370
    %2521 = vmatpush2.bf16.msra.mxu0 %v2369
    %2522 = vmatprep.mubr.bf16.mxu0 %v2052
    %2523 = vmatmul.mubr.bf16.gmra.mxu0 %v2051
    %v2524 = vpop.f32.mrf.mxu0
    %v2525 = vadd.f32 %v2484, %v2524
    %v2526 = vpop.f32.mrf.mxu0
    %v2527 = vadd.f32 %v2486, %v2526
    %v2528 = vpop.f32.mrf.mxu0
    %v2529 = vpop.f32.mrf.mxu0
    %2530 = vdwg.mxu0
    %v2531 = vmax.f32 %v2525, 0.0
    %v2532 = vmax.f32 %v2527, 0.0
    %v2533 = vpack.c.bf16 %v2531, %v2531
    %v2534 = vpack.c.bf16 %v2532, %v2532
    %v2535 = vld [vmem:[#allocation10] sm:$0xf]
    %v2536 = vld [vmem:[#allocation10 + $0x4] sm:$0xf]
    %v2537 = vld [vmem:[#allocation10 + $0x8] sm:$0xf]
    %v2538 = vld [vmem:[#allocation10 + $0xc] sm:$0xf]
    %v2539 = vld [vmem:[#allocation10 + $0x10] sm:$0xf]
    %v2540 = vld [vmem:[#allocation10 + $0x14] sm:$0xf]
    %v2541 = vld [vmem:[#allocation10 + $0x18] sm:$0xf]
    %v2542 = vld [vmem:[#allocation10 + $0x1c] sm:$0xf]
    %v2543 = vld [vmem:[#allocation10 + $0x20] sm:$0xf]
    %v2544 = vld [vmem:[#allocation10 + $0x24] sm:$0xf]
    %v2545 = vld [vmem:[#allocation10 + $0x28] sm:$0xf]
    %v2546 = vld [vmem:[#allocation10 + $0x2c] sm:$0xf]
    %v2547 = vld [vmem:[#allocation10 + $0x30] sm:$0xf]
    %v2548 = vld [vmem:[#allocation10 + $0x34] sm:$0xf]
    %v2549 = vld [vmem:[#allocation10 + $0x38] sm:$0xf]
    %v2550 = vld [vmem:[#allocation10 + $0x3c] sm:$0xf]
    %v2551 = vld [vmem:[#allocation10 + $0x40] sm:$0xf]
    %v2552 = vld [vmem:[#allocation10 + $0x44] sm:$0xf]
    %v2553 = vld [vmem:[#allocation10 + $0x48] sm:$0xf]
    %v2554 = vld [vmem:[#allocation10 + $0x4c] sm:$0xf]
    %v2555 = vld [vmem:[#allocation10 + $0x50] sm:$0xf]
    %v2556 = vld [vmem:[#allocation10 + $0x54] sm:$0xf]
    %v2557 = vld [vmem:[#allocation10 + $0x58] sm:$0xf]
    %v2558 = vld [vmem:[#allocation10 + $0x5c] sm:$0xf]
    %v2559 = vld [vmem:[#allocation10 + $0x60] sm:$0xf]
    %v2560 = vld [vmem:[#allocation10 + $0x64] sm:$0xf]
    %v2561 = vld [vmem:[#allocation10 + $0x68] sm:$0xf]
    %v2562 = vld [vmem:[#allocation10 + $0x6c] sm:$0xf]
    %v2563 = vld [vmem:[#allocation10 + $0x70] sm:$0xf]
    %v2564 = vld [vmem:[#allocation10 + $0x74] sm:$0xf]
    %v2565 = vld [vmem:[#allocation10 + $0x78] sm:$0xf]
    %v2566 = vld [vmem:[#allocation10 + $0x7c] sm:$0xf]
    %v2567 = vld [vmem:[%s6] sm:$0x1]
    %v2569 = vlaneseq
    %v2570 = vshrl.u32 %v2569, 7
    %v2571 = vsub.s32 0, %v2570
    %v2572 = vrot.slane %v2567, %v2571
    %v2606 = vunpack.c.l.b16 %v2535
    %v2607 = vunpack.c.l.b16 %v2536
    %v2608 = vunpack.c.l.b16 %v2537
    %v2609 = vunpack.c.l.b16 %v2538
    %v2610 = vunpack.c.l.b16 %v2539
    %v2611 = vunpack.c.l.b16 %v2540
    %v2612 = vunpack.c.l.b16 %v2541
    %v2613 = vunpack.c.l.b16 %v2542
    %v2614 = vunpack.c.l.b16 %v2543
    %v2615 = vunpack.c.l.b16 %v2544
    %v2616 = vunpack.c.l.b16 %v2545
    %v2617 = vunpack.c.l.b16 %v2546
    %v2618 = vunpack.c.l.b16 %v2547
    %v2619 = vunpack.c.l.b16 %v2548
    %v2620 = vunpack.c.l.b16 %v2549
    %v2621 = vunpack.c.l.b16 %v2550
    %v2622 = vunpack.c.l.b16 %v2551
    %v2623 = vunpack.c.l.b16 %v2552
    %v2624 = vunpack.c.l.b16 %v2553
    %v2625 = vunpack.c.l.b16 %v2554
    %v2626 = vunpack.c.l.b16 %v2555
    %v2627 = vunpack.c.l.b16 %v2556
    %v2628 = vunpack.c.l.b16 %v2557
    %v2629 = vunpack.c.l.b16 %v2558
    %v2630 = vunpack.c.l.b16 %v2559
    %v2631 = vunpack.c.l.b16 %v2560
    %v2632 = vunpack.c.l.b16 %v2561
    %v2633 = vunpack.c.l.b16 %v2562
    %v2634 = vunpack.c.l.b16 %v2563
    %v2635 = vunpack.c.l.b16 %v2564
    %v2636 = vunpack.c.l.b16 %v2565
    %v2637 = vunpack.c.l.b16 %v2566
    %v2638 = vpack.c.b16 %v2607, %v2606
    %v2639 = vpack.c.b16 %v2609, %v2608
    %v2640 = vpack.c.b16 %v2611, %v2610
    %v2641 = vpack.c.b16 %v2613, %v2612
    %v2642 = vpack.c.b16 %v2615, %v2614
    %v2643 = vpack.c.b16 %v2617, %v2616
    %v2644 = vpack.c.b16 %v2619, %v2618
    %v2645 = vpack.c.b16 %v2621, %v2620
    %v2646 = vpack.c.b16 %v2623, %v2622
    %v2647 = vpack.c.b16 %v2625, %v2624
    %v2648 = vpack.c.b16 %v2627, %v2626
    %v2649 = vpack.c.b16 %v2629, %v2628
    %v2650 = vpack.c.b16 %v2631, %v2630
    %v2651 = vpack.c.b16 %v2633, %v2632
    %v2652 = vpack.c.b16 %v2635, %v2634
    %v2653 = vpack.c.b16 %v2637, %v2636
    %2670 = vmatprep.subr.bf16.mxu0 0
    %2671 = vmatpush1.bf16.msra.mxu0 %v2645
    %2672 = vmatprep.subr.bf16.mxu0 0
    %2673 = vmatpush1.bf16.msra.mxu0 %v2644
    %2674 = vmatprep.subr.bf16.mxu0 0
    %2675 = vmatpush1.bf16.msra.mxu0 %v2643
    %2676 = vmatprep.subr.bf16.mxu0 0
    %2677 = vmatpush1.bf16.msra.mxu0 %v2642
    %2678 = vmatprep.subr.bf16.mxu0 0
    %2679 = vmatpush1.bf16.msra.mxu0 %v2641
    %2680 = vmatprep.subr.bf16.mxu0 0
    %2681 = vmatpush1.bf16.msra.mxu0 %v2640
    %2682 = vmatprep.subr.bf16.mxu0 0
    %2683 = vmatpush1.bf16.msra.mxu0 %v2639
    %2684 = vmatprep.subr.bf16.mxu0 0
    %2685 = vmatpush1.bf16.msra.mxu0 %v2638
    %2686 = vmatprep.subr.bf16.mxu0 0
    %2687 = vmatpush2.bf16.msra.mxu0 %v2653
    %2688 = vmatprep.subr.bf16.mxu0 0
    %2689 = vmatpush2.bf16.msra.mxu0 %v2652
    %2690 = vmatprep.subr.bf16.mxu0 0
    %2691 = vmatpush2.bf16.msra.mxu0 %v2651
    %2692 = vmatprep.subr.bf16.mxu0 0
    %2693 = vmatpush2.bf16.msra.mxu0 %v2650
    %2694 = vmatprep.subr.bf16.mxu0 0
    %2695 = vmatpush2.bf16.msra.mxu0 %v2649
    %2696 = vmatprep.subr.bf16.mxu0 0
    %2697 = vmatpush2.bf16.msra.mxu0 %v2648
    %2698 = vmatprep.subr.bf16.mxu0 0
    %2699 = vmatpush2.bf16.msra.mxu0 %v2647
    %2700 = vmatprep.subr.bf16.mxu0 0
    %2701 = vmatpush2.bf16.msra.mxu0 %v2646
    %2702 = vmatprep.mubr.bf16.mxu0 %v2534
    %2703 = vmatmul.mubr.bf16.gmra.mxu0 %v2533
    %v2704 = vpop.f32.mrf.mxu0
    %v2705 = vadd.f32 %v2572, %v2704
    %v2706 = vpop.f32.mrf.mxu0
    %v2707 = vpop.f32.mrf.mxu0
    %v2708 = vpop.f32.mrf.mxu0
    %2709 = vdwg.mxu0
    %2710 = vst [vmem:[#allocation11] sm:$0xff] %v2705
    // Predicated region
    $region50: #{tpu_custom_call.1} parent=1 // pred_check
      _
    $region51: #{tpu_custom_call.1} parent=1 // pred_check_branch
      %2712 = sbr.rel (0) target = $region53
    $region52: #{tpu_custom_call.1} parent=1 // pred_region
      %s2714 = ssub.s32 128, 128
      %2715 = vsyncadd [#allocation4], %s2714
      %s2717 = sshll.u32 [#allocation11], 4
      %s2718 = int_to_ptr.vmem [resolvable:$true] %s2717
      %2720 = dma.vmem_to_hbm [thread:$0]  %s2718, 128, %s7, [#allocation4]
    $region53: #{tpu_custom_call.1} parent=1 // pred_fallthru
      _
    // Predicated region
    $region54: #{tpu_custom_call.1} parent=1 // pred_check
      _
    $region55: #{tpu_custom_call.1} parent=1 // pred_check_branch
      %2722 = sbr.rel (0) target = $region57
    $region56: #{tpu_custom_call.1} parent=1 // pred_region
      %2723 = dma.done [#allocation4], 128
    $region57: #{tpu_custom_call.1} parent=1 // pred_fallthru
      _
    %2724 = vsyncpa [#allocation3], 1
    %2725 = vsyncpa [#allocation6], 1
    %2726 = vsyncpa [#allocation9], 1
    %2727 = vsyncpa [#allocation4], 1

</llo_original>
